<compile_context>
chip_gen: v6e
topology: v6e:2x2x1
jax: 0.10.0
libtpu: 0.0.40
codegen_flags: <defaults>
</compile_context>

<pallas_src>
import functools

import jax
import jax.numpy as jnp
from jax.experimental import pallas as pl
from jax.experimental.pallas import tpu as pltpu

CPAD = 128       # stem channels padded 40 -> 128 (lane-dense)
FPAD = 1024      # feature width padded 1000 -> 1024 (lane-dense)
_MAX_TM = 2048   # patch-row tile (multiple of 16 for bf16 sublane packing)


def _round_up(v, m):
    return (v + m - 1) // m * m


# ----------------------------------------------------------------------------
# Fused Pallas kernel: stem conv (im2col matmul) + BN2d + swish + global-avg-pool
#                      + folded (backbone FC . classifier Linear1) + BN1d + ReLU
#                      + final Linear(1000,1).
# Grid: (N, M_tiles).  M axis is a reduction into a VMEM accumulator; the head
# runs in the last-M-step epilogue per sample.
# ----------------------------------------------------------------------------
def _fused_kernel(patches_ref,   # (1, tm, K)    bf16  im2col patch rows of one sample
                  wstem_ref,     # (K, CPAD)     bf16  stem conv weight (padded cols)
                  bnstem_ref,    # (4, CPAD)     f32   rows: gamma, beta, mean, var
                  whead_ref,     # (CPAD, FPAD)  bf16  folded fc_w @ w1
                  head_ref,      # (7, FPAD)     f32   rows: b_head,gamma,beta,mean,var,w2,b2
                  o_ref,         # (1, 1, 128)   f32   output (lane-broadcast logit)
                  acc_ref,       # (1, CPAD)     f32   pooled-sum accumulator (scratch)
                  *, tm, ohw):
    m = pl.program_id(1)
    num_m = pl.num_programs(1)

    @pl.when(m == 0)
    def _init():
        acc_ref[...] = jnp.zeros_like(acc_ref)

    # --- stem conv as matmul + BatchNorm2d(eval, eps=1e-3) + swish ---
    y = jnp.dot(patches_ref[0], wstem_ref[...],
                preferred_element_type=jnp.float32)              # (tm, CPAD)
    gamma = bnstem_ref[0:1, :]
    beta = bnstem_ref[1:2, :]
    mean = bnstem_ref[2:3, :]
    var = bnstem_ref[3:4, :]
    y = (y - mean) * jax.lax.rsqrt(var + 1e-3) * gamma + beta
    # MemoryEfficientSwish.  Sigmoid in bf16: uses the EUP bf16 path on v6e/v7x
    # (EUP is the saturating slot here); neutral on v5e (upcasts internally).
    y = y * jax.nn.sigmoid(y.astype(jnp.bfloat16)).astype(jnp.float32)

    # --- accumulate partial global-avg-pool sums.  Only the last M-tile can hold
    #     padded spatial rows, so the mask is gated there (perf review). ---
    @pl.when(m < num_m - 1)
    def _acc_full():
        acc_ref[...] += jnp.sum(y, axis=0, keepdims=True)        # (1, CPAD)

    @pl.when(m == num_m - 1)
    def _tail_and_finalize():
        row = m * tm + jax.lax.broadcasted_iota(jnp.int32, (tm, 1), 0)
        y_masked = jnp.where(row < ohw, y, 0.0)                  # mask padded rows
        acc_ref[...] += jnp.sum(y_masked, axis=0, keepdims=True)

        pooled = acc_ref[...] * (1.0 / float(ohw))               # (1, CPAD)
        # Folded backbone FC + classifier Linear1 (exact: purely linear chain),
        # single (1,CPAD)x(CPAD,FPAD) MXU matmul.
        h = jnp.dot(pooled.astype(jnp.bfloat16), whead_ref[...],
                    preferred_element_type=jnp.float32) + head_ref[0:1, :]
        # BatchNorm1d (eval, eps=1e-5) + ReLU, f32
        h = (h - head_ref[3:4, :]) * jax.lax.rsqrt(head_ref[4:5, :] + 1e-5) \
            * head_ref[1:2, :] + head_ref[2:3, :]
        h = jnp.maximum(h, 0.0)
        # Final Linear(1000,1) as a lane reduction (avoid M=1, N=1 MXU matmul)
        logit = jnp.sum(h * head_ref[5:6, :], axis=-1, keepdims=True)        # (1, 1)
        out = jnp.broadcast_to(logit, (1, 128)) + head_ref[6:7, 0:128]       # + b2
        o_ref[...] = out.reshape(1, 1, 128)


# ----------------------------------------------------------------------------
# Glue: im2col (TF-style "same" padding, as in Conv2dStaticSamePadding)
# ----------------------------------------------------------------------------
def _tf_same_pads(size, k, s):
    out = -(-size // s)
    pad = max((out - 1) * s + k - size, 0)
    return (pad // 2, pad - pad // 2), out


def _im2col(x, kh, kw, stride):
    # x: [N, C, H, W] -> patches: [N*OH*OW, C*kh*kw]  (ci-major, (i,j)-minor)
    n, c, h, w = x.shape
    (pt, pb), oh = _tf_same_pads(h, kh, stride)
    (plft, prgt), ow = _tf_same_pads(w, kw, stride)
    xp = jnp.pad(x, ((0, 0), (0, 0), (pt, pb), (plft, prgt)))
    cols = []
    for i in range(kh):
        for j in range(kw):
            cols.append(xp[:, :, i:i + stride * oh:stride, j:j + stride * ow:stride])
    p = jnp.stack(cols, axis=-1)                 # [N, C, OH, OW, kh*kw]
    p = p.transpose(0, 2, 3, 1, 4)               # [N, OH, OW, C, kh*kw]
    return p.reshape(n * oh * ow, c * kh * kw), (n, oh, ow)


# ----------------------------------------------------------------------------
# Model parameters (deterministic synthetic init)
# ----------------------------------------------------------------------------
def init_params(key, c_in=3, c_stem=40, feat=1000):
    ks = jax.random.split(key, 8)
    s = 0.05
    p = {}
    # stem conv (torch layout [Cout, Cin, kh, kw], bias=False) + BN2d
    p["stem_w"] = jax.random.normal(ks[0], (c_stem, c_in, 3, 3), jnp.float32) * s
    p["stem_gamma"] = 1.0 + 0.1 * jax.random.normal(ks[1], (c_stem,), jnp.float32)
    p["stem_beta"] = 0.1 * jax.random.normal(ks[2], (c_stem,), jnp.float32)
    p["stem_mean"] = 0.05 * jax.random.normal(ks[3], (c_stem,), jnp.float32)
    p["stem_var"] = jnp.abs(1.0 + 0.1 * jax.random.normal(ks[4], (c_stem,), jnp.float32))
    # backbone fc -> 1000 features (EfficientNet._fc)
    p["fc_w"] = jax.random.normal(ks[5], (c_stem, feat), jnp.float32) * s
    p["fc_b"] = jnp.zeros((feat,), jnp.float32)
    # classifier head
    kh = jax.random.split(ks[6], 6)
    p["w1"] = jax.random.normal(kh[0], (feat, feat), jnp.float32) * (1.0 / jnp.sqrt(feat))
    p["b1"] = 0.01 * jax.random.normal(kh[1], (feat,), jnp.float32)
    p["bn_gamma"] = 1.0 + 0.1 * jax.random.normal(kh[2], (feat,), jnp.float32)
    p["bn_beta"] = 0.1 * jax.random.normal(kh[3], (feat,), jnp.float32)
    p["bn_mean"] = 0.05 * jax.random.normal(kh[4], (feat,), jnp.float32)
    p["bn_var"] = jnp.abs(1.0 + 0.1 * jax.random.normal(kh[5], (feat,), jnp.float32))
    kh2 = jax.random.split(ks[7], 2)
    p["w2"] = jax.random.normal(kh2[0], (feat, 1), jnp.float32) * (1.0 / jnp.sqrt(feat))
    p["b2"] = 0.01 * jax.random.normal(kh2[1], (1,), jnp.float32)
    return p


# ----------------------------------------------------------------------------
# Parameter packing (shared by kernel path and reference so bf16 rounding points match)
# ----------------------------------------------------------------------------
def _pack_params(p):
    c_stem = p["stem_w"].shape[0]
    feat = p["fc_w"].shape[1]
    # Padded lanes are inert: weights/gamma/beta/mean = 0, var = 1.
    w_stem = p["stem_w"].reshape(c_stem, -1).T                         # (K, c_stem)
    w_stem = jnp.pad(w_stem, ((0, 0), (0, CPAD - c_stem))).astype(jnp.bfloat16)
    bn_stem = jnp.stack([
        jnp.pad(p["stem_gamma"], (0, CPAD - c_stem)),
        jnp.pad(p["stem_beta"], (0, CPAD - c_stem)),
        jnp.pad(p["stem_mean"], (0, CPAD - c_stem)),
        jnp.pad(p["stem_var"], (0, CPAD - c_stem), constant_values=1.0),
    ]).astype(jnp.float32)                                             # (4, CPAD)

    # Host-side fold of the backbone FC into classifier Linear1 (exact algebra:
    # nothing nonlinear between them).
    w_head = p["fc_w"] @ p["w1"]                                       # (c_stem, feat)
    b_head = p["fc_b"] @ p["w1"] + p["b1"]                             # (feat,)
    w_head = jnp.pad(w_head, ((0, CPAD - c_stem), (0, FPAD - feat))).astype(jnp.bfloat16)

    head = jnp.stack([
        jnp.pad(b_head, (0, FPAD - feat)),                             # row 0: folded bias
        jnp.pad(p["bn_gamma"], (0, FPAD - feat)),                      # row 1: gamma
        jnp.pad(p["bn_beta"], (0, FPAD - feat)),                       # row 2: beta
        jnp.pad(p["bn_mean"], (0, FPAD - feat)),                       # row 3: mean
        jnp.pad(p["bn_var"], (0, FPAD - feat), constant_values=1.0),   # row 4: var
        jnp.pad(p["w2"][:, 0], (0, FPAD - feat)),                      # row 5: w2 row
        jnp.full((FPAD,), p["b2"][0]),                                 # row 6: b2 (bcast)
    ]).astype(jnp.float32)                                             # (7, FPAD)
    return w_stem, bn_stem, w_head, head


# ----------------------------------------------------------------------------
# Forward pass
# ----------------------------------------------------------------------------
@functools.partial(jax.jit, static_argnames=("max_tm",))
def efficientnet_model_forward(x, p, max_tm=_MAX_TM):
    # --- glue: im2col patches, reshaped to [N, OHW_pad, K], bf16 for MXU + half DMA ---
    patches, (n, oh, ow) = _im2col(x, 3, 3, stride=2)
    ohw = oh * ow
    k = patches.shape[1]

    tm = min(max_tm, _round_up(ohw, 16))
    ohw_pad = _round_up(ohw, tm)
    mt = ohw_pad // tm

    patches3 = patches.reshape(n, ohw, k)
    patches3 = jnp.pad(patches3, ((0, 0), (0, ohw_pad - ohw), (0, 0))).astype(jnp.bfloat16)

    w_stem, bn_stem, w_head, head = _pack_params(p)

    kernel = functools.partial(_fused_kernel, tm=tm, ohw=ohw)

    # Note: the grid-invariant operand specs (constant index_map) could be
    # single-buffered; total VMEM here is ~2 MiB so it is left as default.
    out3 = pl.pallas_call(
        kernel,
        grid=(n, mt),
        in_specs=[
            pl.BlockSpec((1, tm, k), lambda i, m: (i, m, 0)),     # patch rows (streamed)
            pl.BlockSpec((k, CPAD), lambda i, m: (0, 0)),         # stem weight (resident)
            pl.BlockSpec((4, CPAD), lambda i, m: (0, 0)),         # stem BN pack
            pl.BlockSpec((CPAD, FPAD), lambda i, m: (0, 0)),      # folded head weight
            pl.BlockSpec((7, FPAD), lambda i, m: (0, 0)),         # head pack (bias/BN/w2/b2)
        ],
        out_specs=pl.BlockSpec((1, 1, 128), lambda i, m: (i, 0, 0)),
        out_shape=jax.ShapeDtypeStruct((n, 1, 128), jnp.float32),
        scratch_shapes=[pltpu.VMEM((1, CPAD), jnp.float32)],
        compiler_params=pltpu.CompilerParams(
            dimension_semantics=("parallel", "arbitrary"),
            vmem_limit_bytes=32 * 1024 * 1024),
    )(patches3, w_stem, bn_stem, w_head, head)

    return out3[:, 0, 0:1]                                             # [N, 1]


# ----------------------------------------------------------------------------
# Pure-JAX reference (same math, same bf16 rounding points) for a sanity check
# ----------------------------------------------------------------------------
def _reference(x, p):
    patches, (n, oh, ow) = _im2col(x, 3, 3, stride=2)
    c_stem = p["stem_w"].shape[0]
    pb = patches.astype(jnp.bfloat16)
    wb = p["stem_w"].reshape(c_stem, -1).T.astype(jnp.bfloat16)
    y = jnp.dot(pb, wb, preferred_element_type=jnp.float32)
    y = (y - p["stem_mean"]) * jax.lax.rsqrt(p["stem_var"] + 1e-3) * p["stem_gamma"] + p["stem_beta"]
    y = y * jax.nn.sigmoid(y.astype(jnp.bfloat16)).astype(jnp.float32)
    pooled = y.reshape(n, oh * ow, c_stem).mean(axis=1)
    # same host-side fc -> Linear1 fold / bf16 rounding as the kernel path
    w_head = (p["fc_w"] @ p["w1"]).astype(jnp.bfloat16)
    b_head = p["fc_b"] @ p["w1"] + p["b1"]
    h = jnp.dot(pooled.astype(jnp.bfloat16), w_head,
                preferred_element_type=jnp.float32) + b_head
    h = (h - p["bn_mean"]) * jax.lax.rsqrt(p["bn_var"] + 1e-5) * p["bn_gamma"] + p["bn_beta"]
    h = jnp.maximum(h, 0.0)
    return h @ p["w2"] + p["b2"]


if __name__ == "__main__":
    key = jax.random.PRNGKey(0)
    k_x, k_p = jax.random.split(key)
    params = init_params(k_p)

    # Case 1: 16x16, default tile -> single M-tile, no tail.
    # Case 2: 48x48 with max_tm=128 -> 576 spatial rows = 5 M-tiles, padded tail
    #         (exercises the pooled-sum accumulator and the gated tail-row mask).
    for hw, max_tm in ((16, _MAX_TM), (48, 128)):
        x = jax.random.normal(jax.random.fold_in(k_x, hw), (2, 3, hw, hw), jnp.float32)
        out = jax.block_until_ready(efficientnet_model_forward(x, params, max_tm=max_tm))
        ref = _reference(x, params)
        assert out.shape == (2, 1), out.shape
        assert jnp.allclose(out, ref, rtol=2e-3, atol=2e-3), (hw, out, ref)

    print("KERNEL_OK")
</pallas_src>

<mosaic_0001>
module attributes {stable_mosaic.version = 11 : i64} {
  func.func @_fused_kernel(%arg0: i32, %arg1: i32, %arg2: memref<1x64x27xbf16, #tpu.memory_space<vmem>>, %arg3: memref<27x128xbf16, #tpu.memory_space<vmem>>, %arg4: memref<4x128xf32, #tpu.memory_space<vmem>>, %arg5: memref<128x1024xbf16, #tpu.memory_space<vmem>>, %arg6: memref<7x1024xf32, #tpu.memory_space<vmem>>, %arg7: memref<1x1x128xf32, #tpu.memory_space<vmem>>, %arg8: memref<1x128xf32, #tpu.memory_space<vmem>>) attributes {dimension_semantics = [#tpu.dimension_semantics<parallel>, #tpu.dimension_semantics<arbitrary>], iteration_bounds = array<i64: 2, 1>, scalar_prefetch = 0 : i64, scratch_operands = 1 : i64, tpu.core_type = #tpu.core_type<tc>, window_params = [{transform_indices = @transform_0, window_bounds = array<i64: 1, 64, 27>}, {pipeline_mode = #tpu.pipeline_mode<synchronous>, transform_indices = @transform_1, window_bounds = array<i64: 27, 128>}, {pipeline_mode = #tpu.pipeline_mode<synchronous>, transform_indices = @transform_2, window_bounds = array<i64: 4, 128>}, {pipeline_mode = #tpu.pipeline_mode<synchronous>, transform_indices = @transform_3, window_bounds = array<i64: 128, 1024>}, {pipeline_mode = #tpu.pipeline_mode<synchronous>, transform_indices = @transform_4, window_bounds = array<i64: 7, 1024>}, {transform_indices = @transform_5, window_bounds = array<i64: 1, 1, 128>}]} {
    %c0_i32 = arith.constant 0 : i32
    %0 = arith.cmpi eq, %arg1, %c0_i32 : i32
    %1 = arith.extui %0 : i1 to i32
    %c0_i32_0 = arith.constant 0 : i32
    %2 = arith.cmpi ne, %1, %c0_i32_0 : i32
    scf.if %2 {
      %cst_16 = arith.constant 0.000000e+00 : f32
      %36 = vector.broadcast %cst_16 : f32 to vector<1x128xf32>
      %c0_17 = arith.constant 0 : index
      %c0_18 = arith.constant 0 : index
      %37 = vector.load %arg8[%c0_17, %c0_18] : memref<1x128xf32, #tpu.memory_space<vmem>>, vector<1x128xf32>
      tpu.vector_store %arg8[%c0_17, %c0_18], %36 {strides = array<i32>} : memref<1x128xf32, #tpu.memory_space<vmem>>, vector<1x128xf32>,
    } else {
    }
    %c0 = arith.constant 0 : index
    %c0_1 = arith.constant 0 : index
    %c0_2 = arith.constant 0 : index
    %3 = vector.load %arg2[%c0, %c0_1, %c0_2] : memref<1x64x27xbf16, #tpu.memory_space<vmem>>, vector<1x64x27xbf16>
    %4 = vector.shape_cast %3 : vector<1x64x27xbf16> to vector<64x27xbf16>
    %c0_3 = arith.constant 0 : index
    %c0_4 = arith.constant 0 : index
    %5 = vector.load %arg3[%c0_3, %c0_4] : memref<27x128xbf16, #tpu.memory_space<vmem>>, vector<27x128xbf16>
    %cst = arith.constant dense<0.000000e+00> : vector<64x128xf32>
    %6 = tpu.matmul %4, %5, %cst {dimension_numbers = #tpu.dot_dimension_numbers<[1], [0], [0], [1], [0, 0, 1, 1], [], []>} : vector<64x27xbf16>, vector<27x128xbf16>, vector<64x128xf32> -> vector<64x128xf32>
    %c0_5 = arith.constant 0 : index
    %c0_6 = arith.constant 0 : index
    %7 = vector.load %arg4[%c0_5, %c0_6] : memref<4x128xf32, #tpu.memory_space<vmem>>, vector<1x128xf32>
    %c1 = arith.constant 1 : index
    %c0_7 = arith.constant 0 : index
    %8 = vector.load %arg4[%c1, %c0_7] : memref<4x128xf32, #tpu.memory_space<vmem>>, vector<1x128xf32>
    %c2 = arith.constant 2 : index
    %c0_8 = arith.constant 0 : index
    %9 = vector.load %arg4[%c2, %c0_8] : memref<4x128xf32, #tpu.memory_space<vmem>>, vector<1x128xf32>
    %c3 = arith.constant 3 : index
    %c0_9 = arith.constant 0 : index
    %10 = vector.load %arg4[%c3, %c0_9] : memref<4x128xf32, #tpu.memory_space<vmem>>, vector<1x128xf32>
    %11 = vector.broadcast %9 : vector<1x128xf32> to vector<64x128xf32>
    %12 = arith.subf %6, %11 : vector<64x128xf32>
    %cst_10 = arith.constant 1.000000e-03 : f32
    %13 = vector.broadcast %cst_10 : f32 to vector<1x128xf32>
    %14 = arith.addf %10, %13 : vector<1x128xf32>
    %15 = math.rsqrt %14 : vector<1x128xf32>
    %16 = vector.broadcast %15 : vector<1x128xf32> to vector<64x128xf32>
    %17 = arith.mulf %12, %16 : vector<64x128xf32>
    %18 = vector.broadcast %7 : vector<1x128xf32> to vector<64x128xf32>
    %19 = arith.mulf %17, %18 : vector<64x128xf32>
    %20 = vector.broadcast %8 : vector<1x128xf32> to vector<64x128xf32>
    %21 = arith.addf %19, %20 : vector<64x128xf32>
    %22 = arith.truncf %21 : vector<64x128xf32> to vector<64x128xbf16>
    %23 = arith.negf %22 : vector<64x128xbf16>
    %24 = math.exp %23 : vector<64x128xbf16>
    %cst_11 = arith.constant 1.000000e+00 : bf16
    %25 = vector.broadcast %cst_11 : bf16 to vector<64x128xbf16>
    %26 = arith.addf %25, %24 : vector<64x128xbf16>
    %27 = arith.divf %25, %26 : vector<64x128xbf16>
    %28 = arith.extf %27 : vector<64x128xbf16> to vector<64x128xf32>
    %29 = arith.mulf %21, %28 : vector<64x128xf32>
    %c0_i32_12 = arith.constant 0 : i32
    %30 = arith.cmpi slt, %arg1, %c0_i32_12 : i32
    %31 = arith.extui %30 : i1 to i32
    %c0_i32_13 = arith.constant 0 : i32
    %32 = arith.cmpi ne, %31, %c0_i32_13 : i32
    scf.if %32 {
      %c0_16 = arith.constant 0 : index
      %c0_17 = arith.constant 0 : index
      %36 = vector.load %arg8[%c0_16, %c0_17] : memref<1x128xf32, #tpu.memory_space<vmem>>, vector<1x128xf32>
      %cst_18 = arith.constant dense<0.000000e+00> : vector<128xf32>
      %37 = vector.multi_reduction <add>, %29, %cst_18 [0] : vector<64x128xf32> to vector<128xf32>
      %38 = vector.shape_cast %37 : vector<128xf32> to vector<1x128xf32>
      %39 = arith.addf %36, %38 : vector<1x128xf32>
      %c0_19 = arith.constant 0 : index
      %c0_20 = arith.constant 0 : index
      %40 = vector.load %arg8[%c0_19, %c0_20] : memref<1x128xf32, #tpu.memory_space<vmem>>, vector<1x128xf32>
      tpu.vector_store %arg8[%c0_19, %c0_20], %39 {strides = array<i32>} : memref<1x128xf32, #tpu.memory_space<vmem>>, vector<1x128xf32>,
    } else {
    }
    %c0_i32_14 = arith.constant 0 : i32
    %33 = arith.cmpi eq, %arg1, %c0_i32_14 : i32
    %34 = arith.extui %33 : i1 to i32
    %c0_i32_15 = arith.constant 0 : i32
    %35 = arith.cmpi ne, %34, %c0_i32_15 : i32
    scf.if %35 {
      %c64_i32 = arith.constant 64 : i32
      %36 = arith.muli %arg1, %c64_i32 : i32
      %37 = tpu.iota {dimensions = array<i32: 0>} : vector<64x1xi32>
      %38 = vector.broadcast %36 : i32 to vector<64x1xi32>
      %39 = arith.addi %38, %37 : vector<64x1xi32>
      %c64_i32_16 = arith.constant 64 : i32
      %40 = vector.broadcast %c64_i32_16 : i32 to vector<64x1xi32>
      %41 = arith.cmpi slt, %39, %40 : vector<64x1xi32>
      %cst_17 = arith.constant 0.000000e+00 : f32
      %42 = vector.shape_cast %41 : vector<64x1xi1> to vector<64x1xi1>
      %43 = vector.broadcast %42 : vector<64x1xi1> to vector<64x128xi1>
      %44 = vector.broadcast %cst_17 : f32 to vector<64x128xf32>
      %45 = arith.select %43, %29, %44 : vector<64x128xi1>, vector<64x128xf32>
      %c0_18 = arith.constant 0 : index
      %c0_19 = arith.constant 0 : index
      %46 = vector.load %arg8[%c0_18, %c0_19] : memref<1x128xf32, #tpu.memory_space<vmem>>, vector<1x128xf32>
      %cst_20 = arith.constant dense<0.000000e+00> : vector<128xf32>
      %47 = vector.multi_reduction <add>, %45, %cst_20 [0] : vector<64x128xf32> to vector<128xf32>
      %48 = vector.shape_cast %47 : vector<128xf32> to vector<1x128xf32>
      %49 = arith.addf %46, %48 : vector<1x128xf32>
      %c0_21 = arith.constant 0 : index
      %c0_22 = arith.constant 0 : index
      %50 = vector.load %arg8[%c0_21, %c0_22] : memref<1x128xf32, #tpu.memory_space<vmem>>, vector<1x128xf32>
      tpu.vector_store %arg8[%c0_21, %c0_22], %49 {strides = array<i32>} : memref<1x128xf32, #tpu.memory_space<vmem>>, vector<1x128xf32>,
      %c0_23 = arith.constant 0 : index
      %c0_24 = arith.constant 0 : index
      %51 = vector.load %arg8[%c0_23, %c0_24] : memref<1x128xf32, #tpu.memory_space<vmem>>, vector<1x128xf32>
      %cst_25 = arith.constant 1.562500e-02 : f32
      %52 = vector.broadcast %cst_25 : f32 to vector<1x128xf32>
      %53 = arith.mulf %51, %52 : vector<1x128xf32>
      %54 = arith.truncf %53 : vector<1x128xf32> to vector<1x128xbf16>
      %c0_26 = arith.constant 0 : index
      %c0_27 = arith.constant 0 : index
      %55 = vector.load %arg5[%c0_26, %c0_27] : memref<128x1024xbf16, #tpu.memory_space<vmem>>, vector<128x1024xbf16>
      %cst_28 = arith.constant dense<0.000000e+00> : vector<1x1024xf32>
      %56 = tpu.matmul %54, %55, %cst_28 {dimension_numbers = #tpu.dot_dimension_numbers<[1], [0], [0], [1], [0, 0, 1, 1], [], []>} : vector<1x128xbf16>, vector<128x1024xbf16>, vector<1x1024xf32> -> vector<1x1024xf32>
      %c0_29 = arith.constant 0 : index
      %c0_30 = arith.constant 0 : index
      %57 = vector.load %arg6[%c0_29, %c0_30] : memref<7x1024xf32, #tpu.memory_space<vmem>>, vector<1x1024xf32>
      %58 = arith.addf %56, %57 : vector<1x1024xf32>
      %c3_31 = arith.constant 3 : index
      %c0_32 = arith.constant 0 : index
      %59 = vector.load %arg6[%c3_31, %c0_32] : memref<7x1024xf32, #tpu.memory_space<vmem>>, vector<1x1024xf32>
      %60 = arith.subf %58, %59 : vector<1x1024xf32>
      %c4 = arith.constant 4 : index
      %c0_33 = arith.constant 0 : index
      %61 = vector.load %arg6[%c4, %c0_33] : memref<7x1024xf32, #tpu.memory_space<vmem>>, vector<1x1024xf32>
      %cst_34 = arith.constant 9.99999974E-6 : f32
      %62 = vector.broadcast %cst_34 : f32 to vector<1x1024xf32>
      %63 = arith.addf %61, %62 : vector<1x1024xf32>
      %64 = math.rsqrt %63 : vector<1x1024xf32>
      %65 = arith.mulf %60, %64 : vector<1x1024xf32>
      %c1_35 = arith.constant 1 : index
      %c0_36 = arith.constant 0 : index
      %66 = vector.load %arg6[%c1_35, %c0_36] : memref<7x1024xf32, #tpu.memory_space<vmem>>, vector<1x1024xf32>
      %67 = arith.mulf %65, %66 : vector<1x1024xf32>
      %c2_37 = arith.constant 2 : index
      %c0_38 = arith.constant 0 : index
      %68 = vector.load %arg6[%c2_37, %c0_38] : memref<7x1024xf32, #tpu.memory_space<vmem>>, vector<1x1024xf32>
      %69 = arith.addf %67, %68 : vector<1x1024xf32>
      %cst_39 = arith.constant 0.000000e+00 : f32
      %70 = vector.broadcast %cst_39 : f32 to vector<1x1024xf32>
      %71 = arith.maximumf %69, %70 : vector<1x1024xf32>
      %c5 = arith.constant 5 : index
      %c0_40 = arith.constant 0 : index
      %72 = vector.load %arg6[%c5, %c0_40] : memref<7x1024xf32, #tpu.memory_space<vmem>>, vector<1x1024xf32>
      %73 = arith.mulf %71, %72 : vector<1x1024xf32>
      %cst_41 = arith.constant dense<0.000000e+00> : vector<1xf32>
      %74 = vector.multi_reduction <add>, %73, %cst_41 [1] : vector<1x1024xf32> to vector<1xf32>
      %75 = vector.shape_cast %74 : vector<1xf32> to vector<1x1xf32>
      %76 = vector.shape_cast %75 : vector<1x1xf32> to vector<1x1xf32>
      %77 = vector.broadcast %76 : vector<1x1xf32> to vector<1x128xf32>
      %c6 = arith.constant 6 : index
      %c0_42 = arith.constant 0 : index
      %78 = vector.load %arg6[%c6, %c0_42] : memref<7x1024xf32, #tpu.memory_space<vmem>>, vector<1x128xf32>
      %79 = arith.addf %77, %78 : vector<1x128xf32>
      %80 = vector.shape_cast %79 : vector<1x128xf32> to vector<1x1x128xf32>
      %c0_43 = arith.constant 0 : index
      %c0_44 = arith.constant 0 : index
      %c0_45 = arith.constant 0 : index
      %81 = vector.load %arg7[%c0_43, %c0_44, %c0_45] : memref<1x1x128xf32, #tpu.memory_space<vmem>>, vector<1x1x128xf32>
      tpu.vector_store %arg7[%c0_43, %c0_44, %c0_45], %80 {strides = array<i32>} : memref<1x1x128xf32, #tpu.memory_space<vmem>>, vector<1x1x128xf32>,
    } else {
    }
    return
  }
  func.func @transform_0(%arg0: i32, %arg1: i32) -> (i32, i32, i32) {
    %c0_i32 = arith.constant 0 : i32
    %c0_i32_0 = arith.constant 0 : i32
    return %arg0, %arg1, %c0_i32 : i32, i32, i32
  }
  func.func @transform_1(%arg0: i32, %arg1: i32) -> (i32, i32) {
    %c0_i32 = arith.constant 0 : i32
    %c0_i32_0 = arith.constant 0 : i32
    %c0_i32_1 = arith.constant 0 : i32
    return %c0_i32, %c0_i32_0 : i32, i32
  }
  func.func @transform_2(%arg0: i32, %arg1: i32) -> (i32, i32) {
    %c0_i32 = arith.constant 0 : i32
    %c0_i32_0 = arith.constant 0 : i32
    %c0_i32_1 = arith.constant 0 : i32
    return %c0_i32, %c0_i32_0 : i32, i32
  }
  func.func @transform_3(%arg0: i32, %arg1: i32) -> (i32, i32) {
    %c0_i32 = arith.constant 0 : i32
    %c0_i32_0 = arith.constant 0 : i32
    %c0_i32_1 = arith.constant 0 : i32
    return %c0_i32, %c0_i32_0 : i32, i32
  }
  func.func @transform_4(%arg0: i32, %arg1: i32) -> (i32, i32) {
    %c0_i32 = arith.constant 0 : i32
    %c0_i32_0 = arith.constant 0 : i32
    %c0_i32_1 = arith.constant 0 : i32
    return %c0_i32, %c0_i32_0 : i32, i32
  }
  func.func @transform_5(%arg0: i32, %arg1: i32) -> (i32, i32, i32) {
    %c0_i32 = arith.constant 0 : i32
    %c0_i32_0 = arith.constant 0 : i32
    %c0_i32_1 = arith.constant 0 : i32
    return %arg0, %c0_i32, %c0_i32_0 : i32, i32, i32
  }
}

</mosaic_0001>

<llo_original>
// kernel: efficientnet_model_forward.1
$region0: #{efficientnet_model_forward.1}
  #allocation0 [shape = 'u32[]', space=smem, size = 0x4, offset = 0x4, fixed_abs, tag = 'smem constant byte address 0x4 - core index']
  #allocation1 [shape = 'u32[144,128]{1,0:T(1,128)}', space=vmem, size = 0x12000, scoped, tag = 'internal scratch']
  #allocation2 [shape = 'f32[1,128]{1,0:T(1,128)}', space=vmem, size = 0x200, scoped, tag = 'scratch operand']
  %s0 = inlined_call_operand.vmem [shape: bf16[2,64,27], index: 0, kind: input, shape index: {}]
  %s1 = inlined_call_operand.vmem [shape: bf16[27,128], index: 1, kind: input, shape index: {}]
  %s2 = inlined_call_operand.vmem [shape: f32[4,128], index: 2, kind: input, shape index: {}]
  %s3 = inlined_call_operand.vmem [shape: bf16[128,1024], index: 3, kind: input, shape index: {}]
  %s4 = inlined_call_operand.vmem [shape: f32[7,1024], index: 4, kind: input, shape index: {}]
  %s5 = inlined_call_operand.vmem [shape: f32[2,1,128], index: 5, kind: output, shape index: {}]
  %s6 = sld [smem:[#allocation0]]
  $region65: #{efficientnet_model_forward.1} parent=0
    _
  %s8 = ssub.s32 1, %s6
  %s9 = scalar_select 0, %s8, %s6
  loop: start=0, step=1, limit=4
  $region2: #{efficientnet_model_forward.1} parent=0 // loop_pre_header
    _
  $region3: #{efficientnet_model_forward.1} parent=0 // loop_header
    %s11 = sphi 0, %s15
    %p12 = scmp.ge.s32.totalorder %s11, 4
    %s18 = sphi 0, %s30
    %s19 = sphi 0, %s26
    %s20 = sphi 0, %s18
    %s21 = sphi 0, %s19
    %s22 = sphi 0, %s20
    %s23 = sphi 0, %s21
    %s35 = sphi 0, %s37
    %s38 = sphi 0, %s35
    %s39 = sphi 0, %s38
    %s55 = sphi 0, %s39
    %s59 = sphi 0, %s59
    %s61 = sphi 0, %s59
    %s62 = sphi 0, %s61
    %s76 = sphi 0, %s62
    %s80 = sphi 0, %s80
    %s82 = sphi 0, %s80
    %s83 = sphi 0, %s82
    %s97 = sphi 0, %s83
    %s101 = sphi 0, %s101
    %s103 = sphi 0, %s101
    %s104 = sphi 0, %s103
    %s118 = sphi 0, %s104
    %s122 = sphi 0, %s122
    %s124 = sphi 0, %s122
    %s125 = sphi 0, %s124
    %s139 = sphi 0, %s125
    %s145 = sphi 0, %s147
    %s148 = sphi 0, %s145
    %s149 = sphi 0, %s148
    %s165 = sphi 0, %s149
  $region4: #{efficientnet_model_forward.1} parent=0 // loop_header_branch
    %14 = sbr.rel (%p12) target = $region8
  $region5: #{efficientnet_model_forward.1} parent=0 // loop_body
    %s16 = ssub.s32 %s11, 1
    %s17 = ssub.s32 %s11, 2
    %s24 = sadd.s32 1, %s19
    %p25 = scmp.ge.s32.totalorder %s24, 1
    %s26 = scalar_select %p25, 0, %s24
    %s27 = sadd.s32 1, %s18
    %s28 = scalar_select %p25, %s27, %s18
    %p29 = scmp.ge.s32.totalorder %s28, 2
    %s30 = scalar_select %p29, 0, %s28
    %s31 = ssub.s32 %s18, %s30
    %s32 = ssub.s32 %s19, %s26
    %s33 = sor.u32 %s31, %s32
    %p34 = scmp.eq.s32.totalorder %s33, 0
    %s36 = sadd.s32 %s35, 1
    %s37 = scalar_select %p34, %s35, %s36
    %p40 = pneg %p34
    %p41 = scmp.eq.s32.totalorder %s11, 1
    %p42 = por %p40, %p41
    %p43 = scmp.ne.s32.totalorder %s35, %s38
    %p44 = scmp.eq.s32.totalorder %s11, 0
    %p45 = por %p43, %p44
    %p46 = scmp.ne.s32.totalorder %s35, %s38
    %p47 = scmp.eq.s32.totalorder %s16, 1
    %p48 = por %p46, %p47
    %p49 = scmp.ne.s32.totalorder %s38, %s39
    %p50 = scmp.eq.s32.totalorder %s16, 0
    %p51 = por %p49, %p50
    %p52 = scmp.ne.s32.totalorder %s38, %s39
    %p53 = scmp.eq.s32.totalorder %s17, 1
    %p54 = por %p52, %p53
    %p56 = scmp.ne.s32.totalorder %s39, %s55
    %p57 = scmp.eq.s32.totalorder %s17, 0
    %p58 = por %p56, %p57
    %s60 = sadd.s32 %s59, 1
    %p63 = scmp.eq.s32.totalorder %s11, 1
    %p64 = scmp.ne.s32.totalorder %s59, %s61
    %p65 = scmp.eq.s32.totalorder %s11, 0
    %p66 = por %p64, %p65
    %p67 = scmp.ne.s32.totalorder %s59, %s61
    %p68 = scmp.eq.s32.totalorder %s16, 1
    %p69 = por %p67, %p68
    %p70 = scmp.ne.s32.totalorder %s61, %s62
    %p71 = scmp.eq.s32.totalorder %s16, 0
    %p72 = por %p70, %p71
    %p73 = scmp.ne.s32.totalorder %s61, %s62
    %p74 = scmp.eq.s32.totalorder %s17, 1
    %p75 = por %p73, %p74
    %p77 = scmp.ne.s32.totalorder %s62, %s76
    %p78 = scmp.eq.s32.totalorder %s17, 0
    %p79 = por %p77, %p78
    %s81 = sadd.s32 %s80, 1
    %p84 = scmp.eq.s32.totalorder %s11, 1
    %p85 = scmp.ne.s32.totalorder %s80, %s82
    %p86 = scmp.eq.s32.totalorder %s11, 0
    %p87 = por %p85, %p86
    %p88 = scmp.ne.s32.totalorder %s80, %s82
    %p89 = scmp.eq.s32.totalorder %s16, 1
    %p90 = por %p88, %p89
    %p91 = scmp.ne.s32.totalorder %s82, %s83
    %p92 = scmp.eq.s32.totalorder %s16, 0
    %p93 = por %p91, %p92
    %p94 = scmp.ne.s32.totalorder %s82, %s83
    %p95 = scmp.eq.s32.totalorder %s17, 1
    %p96 = por %p94, %p95
    %p98 = scmp.ne.s32.totalorder %s83, %s97
    %p99 = scmp.eq.s32.totalorder %s17, 0
    %p100 = por %p98, %p99
    %s102 = sadd.s32 %s101, 1
    %p105 = scmp.eq.s32.totalorder %s11, 1
    %p106 = scmp.ne.s32.totalorder %s101, %s103
    %p107 = scmp.eq.s32.totalorder %s11, 0
    %p108 = por %p106, %p107
    %p109 = scmp.ne.s32.totalorder %s101, %s103
    %p110 = scmp.eq.s32.totalorder %s16, 1
    %p111 = por %p109, %p110
    %p112 = scmp.ne.s32.totalorder %s103, %s104
    %p113 = scmp.eq.s32.totalorder %s16, 0
    %p114 = por %p112, %p113
    %p115 = scmp.ne.s32.totalorder %s103, %s104
    %p116 = scmp.eq.s32.totalorder %s17, 1
    %p117 = por %p115, %p116
    %p119 = scmp.ne.s32.totalorder %s104, %s118
    %p120 = scmp.eq.s32.totalorder %s17, 0
    %p121 = por %p119, %p120
    %s123 = sadd.s32 %s122, 1
    %p126 = scmp.eq.s32.totalorder %s11, 1
    %p127 = scmp.ne.s32.totalorder %s122, %s124
    %p128 = scmp.eq.s32.totalorder %s11, 0
    %p129 = por %p127, %p128
    %p130 = scmp.ne.s32.totalorder %s122, %s124
    %p131 = scmp.eq.s32.totalorder %s16, 1
    %p132 = por %p130, %p131
    %p133 = scmp.ne.s32.totalorder %s124, %s125
    %p134 = scmp.eq.s32.totalorder %s16, 0
    %p135 = por %p133, %p134
    %p136 = scmp.ne.s32.totalorder %s124, %s125
    %p137 = scmp.eq.s32.totalorder %s17, 1
    %p138 = por %p136, %p137
    %p140 = scmp.ne.s32.totalorder %s125, %s139
    %p141 = scmp.eq.s32.totalorder %s17, 0
    %p142 = por %p140, %p141
    %s143 = ssub.s32 %s18, %s30
    %p144 = scmp.eq.s32.totalorder %s143, 0
    %s146 = sadd.s32 %s145, 1
    %s147 = scalar_select %p144, %s145, %s146
    %p150 = pneg %p144
    %p151 = scmp.eq.s32.totalorder %s11, 1
    %p152 = por %p150, %p151
    %p153 = scmp.ne.s32.totalorder %s145, %s148
    %p154 = scmp.eq.s32.totalorder %s11, 0
    %p155 = por %p153, %p154
    %p156 = scmp.ne.s32.totalorder %s145, %s148
    %p157 = scmp.eq.s32.totalorder %s16, 1
    %p158 = por %p156, %p157
    %p159 = scmp.ne.s32.totalorder %s148, %s149
    %p160 = scmp.eq.s32.totalorder %s16, 0
    %p161 = por %p159, %p160
    %p162 = scmp.ne.s32.totalorder %s148, %s149
    %p163 = scmp.eq.s32.totalorder %s17, 1
    %p164 = por %p162, %p163
    %p166 = scmp.ne.s32.totalorder %s149, %s165
    %p167 = scmp.eq.s32.totalorder %s17, 0
    %p168 = por %p166, %p167
    %p169 = scmp.le.s32.totalorder 1, %s11
    %p170 = scmp.lt.s32.totalorder %s11, 3
    %p171 = pnand %p169, %p170
    %p172 = pneg %p171
    // Predicated region
    $region9: #{efficientnet_model_forward.1} parent=5 // pred_check
      _
    $region10: #{efficientnet_model_forward.1} parent=5 // pred_check_branch
      %174 = sbr.rel (%p171) target = $region12
    $region11: #{efficientnet_model_forward.1} parent=5 // pred_region
      %s175 = ssub.s32 %s11, 1
      // Predicated region
      $region13: #{efficientnet_model_forward.1} parent=11 // pred_check
        %p176 = pneg %p72
      $region14: #{efficientnet_model_forward.1} parent=11 // pred_check_branch
        %178 = sbr.rel (%p176) target = $region16
      $region15: #{efficientnet_model_forward.1} parent=11 // pred_region
        _
      $region16: #{efficientnet_model_forward.1} parent=11 // pred_fallthru
        _
      // Predicated region
      $region17: #{efficientnet_model_forward.1} parent=11 // pred_check
        %p179 = pneg %p93
      $region18: #{efficientnet_model_forward.1} parent=11 // pred_check_branch
        %181 = sbr.rel (%p179) target = $region20
      $region19: #{efficientnet_model_forward.1} parent=11 // pred_region
        _
      $region20: #{efficientnet_model_forward.1} parent=11 // pred_fallthru
        _
      // Predicated region
      $region21: #{efficientnet_model_forward.1} parent=11 // pred_check
        %p182 = pneg %p114
      $region22: #{efficientnet_model_forward.1} parent=11 // pred_check_branch
        %184 = sbr.rel (%p182) target = $region24
      $region23: #{efficientnet_model_forward.1} parent=11 // pred_region
        _
      $region24: #{efficientnet_model_forward.1} parent=11 // pred_fallthru
        _
      // Predicated region
      $region25: #{efficientnet_model_forward.1} parent=11 // pred_check
        %p185 = pneg %p135
      $region26: #{efficientnet_model_forward.1} parent=11 // pred_check_branch
        %187 = sbr.rel (%p185) target = $region28
      $region27: #{efficientnet_model_forward.1} parent=11 // pred_region
        _
      $region28: #{efficientnet_model_forward.1} parent=11 // pred_fallthru
        _
    $region12: #{efficientnet_model_forward.1} parent=5 // pred_fallthru
      _
    %p188 = scmp.lt.s32.totalorder %s11, 2
    // Predicated region
    $region29: #{efficientnet_model_forward.1} parent=5 // pred_check
      %p189 = pneg %p188
    $region30: #{efficientnet_model_forward.1} parent=5 // pred_check_branch
      %191 = sbr.rel (%p189) target = $region32
    $region31: #{efficientnet_model_forward.1} parent=5 // pred_region
      // Predicated region
      $region33: #{efficientnet_model_forward.1} parent=31 // pred_check
        %p192 = pneg %p45
      $region34: #{efficientnet_model_forward.1} parent=31 // pred_check_branch
        %194 = sbr.rel (%p192) target = $region36
      $region35: #{efficientnet_model_forward.1} parent=31 // pred_region
        %s195 = smul.u32 8, %s19
        %p196 = scmp.lt.s32.totalorder %s18, 1
        %s197 = scalar_select %p196, %s18, 1
        %p198 = scmp.lt.s32.totalorder %s195, 7
        %s199 = scalar_select %p198, %s195, 7
        %s200 = smul.addr %s197, 8
        %s201 = sadd.s32 %s199, %s200
        %s202 = smul.addr %s201, 4
        %s203 = scalar_lea.vmem %s0, %s202
        %s204 = smul.u32 8, %s19
      $region36: #{efficientnet_model_forward.1} parent=31 // pred_fallthru
        _
    $region32: #{efficientnet_model_forward.1} parent=5 // pred_fallthru
      _
    %p205 = scmp.le.s32.totalorder 1, %s11
    %p206 = scmp.lt.s32.totalorder %s11, 3
    %p207 = pnand %p205, %p206
    %p208 = pneg %p207
    // Predicated region
    $region37: #{efficientnet_model_forward.1} parent=5 // pred_check
      _
    $region38: #{efficientnet_model_forward.1} parent=5 // pred_check_branch
      %210 = sbr.rel (%p207) target = $region40
    $region39: #{efficientnet_model_forward.1} parent=5 // pred_region
      %s211 = ssub.s32 %s11, 1
      %s212 = smul.u32 8, %s21
      %p213 = scmp.lt.s32.totalorder %s20, 1
      %s214 = scalar_select %p213, %s20, 1
      %p215 = scmp.lt.s32.totalorder %s212, 7
      %s216 = scalar_select %p215, %s212, 7
      %s217 = smul.addr %s214, 8
      %s218 = sadd.s32 %s216, %s217
      %s219 = smul.addr %s218, 4
      %s220 = scalar_lea.vmem %s0, %s219
      %p221 = pneg %p51
      %p222 = pneg %p48
      %p223 = pneg %p72
      %p224 = pneg %p69
      %p225 = pneg %p93
      %p226 = pneg %p90
      %p227 = pneg %p114
      %p228 = pneg %p111
      %p229 = pneg %p135
      %p230 = pneg %p132
      %p231 = pneg %p161
      %p232 = pneg %p158
      %p233 = scmp.lt.s32.totalorder %s20, 1
      %s234 = scalar_select %p233, %s20, 1
      %s235 = scalar_lea.vmem %s5, %s234
      %s236 = smul.u32 8, %s21
      %p237 = scmp.lt.s32.totalorder %s20, 1
      %s238 = scalar_select %p237, %s20, 1
      %p239 = scmp.lt.s32.totalorder %s236, 7
      %s240 = scalar_select %p239, %s236, 7
      %s241 = smul.addr %s238, 8
      %s242 = sadd.s32 %s240, %s241
      %s243 = smul.addr %s242, 4
      %s244 = scalar_lea.vmem %s0, %s243
      %s245 = smul.u32 8, %s21
      %p246 = scmp.lt.s32.totalorder %s20, 1
      %s247 = scalar_select %p246, %s20, 1
      %s248 = scalar_lea.vmem %s5, %s247
      %p251 = scmp.eq.s32.totalorder %s21, 0
      // Predicated region
      $region41: #{efficientnet_model_forward.1} parent=39 // pred_check
        %p252 = pneg %p251
      $region42: #{efficientnet_model_forward.1} parent=39 // pred_check_branch
        %254 = sbr.rel (%p252) target = $region44
      $region43: #{efficientnet_model_forward.1} parent=39 // pred_region
        %255 = vst [vmem:[#allocation2] sm:$0x1] 0.0
      $region44: #{efficientnet_model_forward.1} parent=39 // pred_fallthru
        _
      %v256 = vld [vmem:[%s244] sm:$0xf]
      %v257 = vld [vmem:[%s244 + $0x4] sm:$0xf]
      %v258 = vld [vmem:[%s244 + $0x8] sm:$0xf]
      %v259 = vld [vmem:[%s244 + $0xc] sm:$0xf]
      %v260 = vld [vmem:[%s244 + $0x10] sm:$0xf]
      %v261 = vld [vmem:[%s244 + $0x14] sm:$0xf]
      %v262 = vld [vmem:[%s244 + $0x18] sm:$0xf]
      %v263 = vld [vmem:[%s244 + $0x1c] sm:$0xf]
      %v264 = vld [vmem:[%s1] sm:$0xf]
      %v265 = vld [vmem:[%s1 + $0x4] sm:$0xf]
      %v266 = vld [vmem:[%s1 + $0x8] sm:$0xf]
      %v267 = vld [vmem:[%s1 + $0xc] sm:$0x3]
      %v276 = vunpack.c.l.b16 %v256
      %v277 = vunpack.c.l.b16 %v257
      %v278 = vunpack.c.l.b16 %v258
      %v279 = vunpack.c.l.b16 %v259
      %v280 = vunpack.c.l.b16 %v260
      %v281 = vunpack.c.l.b16 %v261
      %v282 = vunpack.c.l.b16 %v262
      %v283 = vunpack.c.l.b16 %v263
      %v284 = vpack.c.b16 %v277, %v276
      %v285 = vpack.c.b16 %v279, %v278
      %v286 = vpack.c.b16 %v281, %v280
      %v287 = vpack.c.b16 %v283, %v282
      %v292 = vunpack.c.l.b16 %v264
      %v293 = vunpack.c.l.b16 %v265
      %v294 = vunpack.c.l.b16 %v266
      %v295 = vunpack.c.l.b16 %v267
      %v296 = vpack.c.b16 %v293, %v292
      %v297 = vpack.c.b16 %v295, %v294
      %vm299 = vcmask 220160
      %v301 = vsel %vm299, %v284, 0
      %v304 = vsel %vm299, %v285, 0
      %v307 = vsel %vm299, %v286, 0
      %v310 = vsel %vm299, %v287, 0
      %vm312 = vcmask 1044480
      %vm313 = vcmask 1045504
      %v314 = vsel %vm312, 4294967295, 65535
      %v315 = vsel %vm313, %v314, 0
      %v317 = vand.u32 %v297, %v315
      %319 = vmatprep.subr.bf16.mxu0 0
      %320 = vmatpush1.bf16.msra.mxu0 0
      %321 = vmatprep.subr.bf16.mxu0 0
      %322 = vmatpush1.bf16.msra.mxu0 0
      %323 = vmatprep.subr.bf16.mxu0 0
      %324 = vmatpush1.bf16.msra.mxu0 0
      %325 = vmatprep.subr.bf16.mxu0 0
      %326 = vmatpush1.bf16.msra.mxu0 0
      %327 = vmatprep.subr.bf16.mxu0 0
      %328 = vmatpush1.bf16.msra.mxu0 0
      %329 = vmatprep.subr.bf16.mxu0 0
      %330 = vmatpush1.bf16.msra.mxu0 0
      %331 = vmatprep.subr.bf16.mxu0 0
      %332 = vmatpush1.bf16.msra.mxu0 %v317
      %333 = vmatprep.subr.bf16.mxu0 0
      %334 = vmatpush1.bf16.msra.mxu0 %v296
      %335 = vmatprep.subr.bf16.mxu0 0
      %336 = vmatpush2.bf16.msra.mxu0 0
      %337 = vmatprep.subr.bf16.mxu0 0
      %338 = vmatpush2.bf16.msra.mxu0 0
      %339 = vmatprep.subr.bf16.mxu0 0
      %340 = vmatpush2.bf16.msra.mxu0 0
      %341 = vmatprep.subr.bf16.mxu0 0
      %342 = vmatpush2.bf16.msra.mxu0 0
      %343 = vmatprep.subr.bf16.mxu0 0
      %344 = vmatpush2.bf16.msra.mxu0 0
      %345 = vmatprep.subr.bf16.mxu0 0
      %346 = vmatpush2.bf16.msra.mxu0 0
      %347 = vmatprep.subr.bf16.mxu0 0
      %348 = vmatpush2.bf16.msra.mxu0 0
      %349 = vmatprep.subr.bf16.mxu0 0
      %350 = vmatpush2.bf16.msra.mxu0 0
      %351 = vmatprep.mubr.bf16.mxu0 0
      %352 = vmatmul.mubr.bf16.gmra.mxu0 %v301
      %v353 = vpop.f32.mrf.mxu0
      %v354 = vadd.f32 0.0, %v353
      %v355 = vpop.f32.mrf.mxu0
      %v356 = vpop.f32.mrf.mxu0
      %v357 = vadd.f32 0.0, %v356
      %v358 = vpop.f32.mrf.mxu0
      %359 = vmatprep.mubr.bf16.mxu0 0
      %360 = vmatmul.mubr.bf16.gmra.mxu0 %v304
      %v361 = vpop.f32.mrf.mxu0
      %v362 = vadd.f32 0.0, %v361
      %v363 = vpop.f32.mrf.mxu0
      %v364 = vpop.f32.mrf.mxu0
      %v365 = vadd.f32 0.0, %v364
      %v366 = vpop.f32.mrf.mxu0
      %367 = vmatprep.mubr.bf16.mxu0 0
      %368 = vmatmul.mubr.bf16.gmra.mxu0 %v307
      %v369 = vpop.f32.mrf.mxu0
      %v370 = vadd.f32 0.0, %v369
      %v371 = vpop.f32.mrf.mxu0
      %v372 = vpop.f32.mrf.mxu0
      %v373 = vadd.f32 0.0, %v372
      %v374 = vpop.f32.mrf.mxu0
      %375 = vmatprep.mubr.bf16.mxu0 0
      %376 = vmatmul.mubr.bf16.gmra.mxu0 %v310
      %v377 = vpop.f32.mrf.mxu0
      %v378 = vadd.f32 0.0, %v377
      %v379 = vpop.f32.mrf.mxu0
      %v380 = vpop.f32.mrf.mxu0
      %v381 = vadd.f32 0.0, %v380
      %v382 = vpop.f32.mrf.mxu0
      %383 = vdwg.mxu0
      %v384 = vld [vmem:[%s2] sm:$0x1]
      %v385 = vld [vmem:[%s2 + $0x1] sm:$0x1]
      %v386 = vld [vmem:[%s2 + $0x2] sm:$0x1]
      %v387 = vld [vmem:[%s2 + $0x3] sm:$0x1]
      %v388 = vlaneseq
      %v389 = vshrl.u32 %v388, 7
      %v390 = vsub.s32 0, %v389
      %v391 = vrot.slane %v386, %v390
      %v392 = vsub.f32 %v354, %v391
      %v393 = vsub.f32 %v357, %v391
      %v394 = vsub.f32 %v362, %v391
      %v395 = vsub.f32 %v365, %v391
      %v396 = vsub.f32 %v370, %v391
      %v397 = vsub.f32 %v373, %v391
      %v398 = vsub.f32 %v378, %v391
      %v399 = vsub.f32 %v381, %v391
      %v400 = vadd.f32 %v387, 0.001
      %v401 = vrsqrt.pop %v400
      %v402 = vlaneseq
      %v403 = vshrl.u32 %v402, 7
      %v404 = vsub.s32 0, %v403
      %v405 = vrot.slane %v401, %v404
      %v406 = vmul.f32 %v392, %v405
      %v407 = vmul.f32 %v393, %v405
      %v408 = vmul.f32 %v394, %v405
      %v409 = vmul.f32 %v395, %v405
      %v410 = vmul.f32 %v396, %v405
      %v411 = vmul.f32 %v397, %v405
      %v412 = vmul.f32 %v398, %v405
      %v413 = vmul.f32 %v399, %v405
      %v414 = vlaneseq
      %v415 = vshrl.u32 %v414, 7
      %v416 = vsub.s32 0, %v415
      %v417 = vrot.slane %v384, %v416
      %v418 = vmul.f32 %v406, %v417
      %v419 = vmul.f32 %v407, %v417
      %v420 = vmul.f32 %v408, %v417
      %v421 = vmul.f32 %v409, %v417
      %v422 = vmul.f32 %v410, %v417
      %v423 = vmul.f32 %v411, %v417
      %v424 = vmul.f32 %v412, %v417
      %v425 = vmul.f32 %v413, %v417
      %v426 = vlaneseq
      %v427 = vshrl.u32 %v426, 7
      %v428 = vsub.s32 0, %v427
      %v429 = vrot.slane %v385, %v428
      %v430 = vadd.f32 %v418, %v429
      %v431 = vadd.f32 %v419, %v429
      %v432 = vadd.f32 %v420, %v429
      %v433 = vadd.f32 %v421, %v429
      %v434 = vadd.f32 %v422, %v429
      %v435 = vadd.f32 %v423, %v429
      %v436 = vadd.f32 %v424, %v429
      %v437 = vadd.f32 %v425, %v429
      %v438 = vpack.c.bf16 %v431, %v430
      %v439 = vpack.c.bf16 %v433, %v432
      %v440 = vpack.c.bf16 %v435, %v434
      %v441 = vpack.c.bf16 %v437, %v436
      %v442 = vxor.u32 %v438, 2147516416
      %v443 = vxor.u32 %v439, 2147516416
      %v444 = vxor.u32 %v440, 2147516416
      %v445 = vxor.u32 %v441, 2147516416
      %v447 = vmul.bf16 %v442, 1069105081
      %v448 = vpow.bf16.pop %v447
      %v450 = vmul.bf16 %v443, 1069105081
      %v451 = vpow.bf16.pop %v450
      %v453 = vmul.bf16 %v444, 1069105081
      %v454 = vpow.bf16.pop %v453
      %v456 = vmul.bf16 %v445, 1069105081
      %v457 = vpow.bf16.pop %v456
      %v458 = vadd.bf16 %v448, 1065369472
      %v459 = vadd.bf16 %v451, 1065369472
      %v460 = vadd.bf16 %v454, 1065369472
      %v461 = vadd.bf16 %v457, 1065369472
      %v462 = vrcp.bf16.pop %v458
      %v463 = vmul.bf16 1065369472, %v462
      %v464 = vrcp.bf16.pop %v459
      %v465 = vmul.bf16 1065369472, %v464
      %v466 = vrcp.bf16.pop %v460
      %v467 = vmul.bf16 1065369472, %v466
      %v468 = vrcp.bf16.pop %v461
      %v469 = vmul.bf16 1065369472, %v468
      %v470 = vunpack.c.l.bf16 %v463
      %v471 = vunpack.c.h.bf16 %v463
      %v472 = vunpack.c.l.bf16 %v465
      %v473 = vunpack.c.h.bf16 %v465
      %v474 = vunpack.c.l.bf16 %v467
      %v475 = vunpack.c.h.bf16 %v467
      %v476 = vunpack.c.l.bf16 %v469
      %v477 = vunpack.c.h.bf16 %v469
      %v478 = vmul.f32 %v430, %v470
      %v479 = vmul.f32 %v431, %v471
      %v480 = vmul.f32 %v432, %v472
      %v481 = vmul.f32 %v433, %v473
      %v482 = vmul.f32 %v434, %v474
      %v483 = vmul.f32 %v435, %v475
      %v484 = vmul.f32 %v436, %v476
      %v485 = vmul.f32 %v437, %v477
      %p486 = scmp.lt.s32.totalorder %s21, 0
      // Predicated region
      $region45: #{efficientnet_model_forward.1} parent=39 // pred_check
        %p487 = pneg %p486
      $region46: #{efficientnet_model_forward.1} parent=39 // pred_check_branch
        %489 = sbr.rel (%p487) target = $region48
      $region47: #{efficientnet_model_forward.1} parent=39 // pred_region
        %v490 = vld [vmem:[#allocation2] sm:$0x1]
        %v491 = vadd.f32 %v478, %v479
        %v492 = vadd.f32 %v491, %v480
        %v493 = vadd.f32 %v492, %v481
        %v494 = vadd.f32 %v493, %v482
        %v495 = vadd.f32 %v494, %v483
        %v496 = vadd.f32 %v495, %v484
        %v497 = vadd.f32 %v496, %v485
        %v498 = vrot.slane %v497, 4
        %v499 = vadd.f32 %v497, %v498
        %v500 = vrot.slane %v499, 2
        %v501 = vadd.f32 %v499, %v500
        %v502 = vrot.slane %v501, 1
        %v503 = vadd.f32 %v501, %v502
        %v504 = vadd.f32 %v490, %v503
        %505 = vst [vmem:[#allocation2] sm:$0x1] %v504
      $region48: #{efficientnet_model_forward.1} parent=39 // pred_fallthru
        _
      // Predicated region
      $region49: #{efficientnet_model_forward.1} parent=39 // pred_check
        %p506 = pneg %p251
      $region50: #{efficientnet_model_forward.1} parent=39 // pred_check_branch
        %508 = sbr.rel (%p506) target = $region52
      $region51: #{efficientnet_model_forward.1} parent=39 // pred_region
        %s509 = smul.u32 %s21, 64
        %v510 = vlaneseq
        %v511 = vshrl.u32 %v510, 7
        %v512 = vadd.s32 %v511, 8
        %v513 = vadd.s32 %v511, 16
        %v514 = vadd.s32 %v511, 24
        %v515 = vadd.s32 %v511, 32
        %v516 = vadd.s32 %v511, 40
        %v517 = vadd.s32 %v511, 48
        %v518 = vadd.s32 %v511, 56
        %v519 = vstv %s509
        %v520 = vadd.s32 %v519, %v511
        %v521 = vadd.s32 %v519, %v512
        %v522 = vadd.s32 %v519, %v513
        %v523 = vadd.s32 %v519, %v514
        %v524 = vadd.s32 %v519, %v515
        %v525 = vadd.s32 %v519, %v516
        %v526 = vadd.s32 %v519, %v517
        %v527 = vadd.s32 %v519, %v518
        %vm528 = vcmp.lt.s32.totalorder %v520, 64
        %vm529 = vcmp.lt.s32.totalorder %v521, 64
        %vm530 = vcmp.lt.s32.totalorder %v522, 64
        %vm531 = vcmp.lt.s32.totalorder %v523, 64
        %vm532 = vcmp.lt.s32.totalorder %v524, 64
        %vm533 = vcmp.lt.s32.totalorder %v525, 64
        %vm534 = vcmp.lt.s32.totalorder %v526, 64
        %vm535 = vcmp.lt.s32.totalorder %v527, 64
        %v536 = vsel %vm528, 1, 0
        %v537 = vsel %vm529, 1, 0
        %v538 = vsel %vm530, 1, 0
        %v539 = vsel %vm531, 1, 0
        %v540 = vsel %vm532, 1, 0
        %v541 = vsel %vm533, 1, 0
        %v542 = vsel %vm534, 1, 0
        %v543 = vsel %vm535, 1, 0
        %vm544 = vcmp.eq.s32.totalorder %v536, 1
        %vm545 = vcmp.eq.s32.totalorder %v537, 1
        %vm546 = vcmp.eq.s32.totalorder %v538, 1
        %vm547 = vcmp.eq.s32.totalorder %v539, 1
        %vm548 = vcmp.eq.s32.totalorder %v540, 1
        %vm549 = vcmp.eq.s32.totalorder %v541, 1
        %vm550 = vcmp.eq.s32.totalorder %v542, 1
        %vm551 = vcmp.eq.s32.totalorder %v543, 1
        %v552 = vsel %vm544, %v478, 0.0
        %v553 = vsel %vm545, %v479, 0.0
        %v554 = vsel %vm546, %v480, 0.0
        %v555 = vsel %vm547, %v481, 0.0
        %v556 = vsel %vm548, %v482, 0.0
        %v557 = vsel %vm549, %v483, 0.0
        %v558 = vsel %vm550, %v484, 0.0
        %v559 = vsel %vm551, %v485, 0.0
        %v560 = vld [vmem:[#allocation2] sm:$0x1]
        %v561 = vadd.f32 %v552, %v553
        %v562 = vadd.f32 %v561, %v554
        %v563 = vadd.f32 %v562, %v555
        %v564 = vadd.f32 %v563, %v556
        %v565 = vadd.f32 %v564, %v557
        %v566 = vadd.f32 %v565, %v558
        %v567 = vadd.f32 %v566, %v559
        %v568 = vrot.slane %v567, 4
        %v569 = vadd.f32 %v567, %v568
        %v570 = vrot.slane %v569, 2
        %v571 = vadd.f32 %v569, %v570
        %v572 = vrot.slane %v571, 1
        %v573 = vadd.f32 %v571, %v572
        %v574 = vadd.f32 %v560, %v573
        %575 = vst [vmem:[#allocation2] sm:$0x1] %v574
        %v576 = vld [vmem:[#allocation2] sm:$0x1]
        %v577 = vmul.f32 %v576, 0.015625
        %v578 = vpack.c.bf16 %v577, %v577
        %v579 = vld [vmem:[%s3] sm:$0xff]
        %v580 = vld [vmem:[%s3 + $0x8] sm:$0xff]
        %v581 = vld [vmem:[%s3 + $0x10] sm:$0xff]
        %v582 = vld [vmem:[%s3 + $0x18] sm:$0xff]
        %v583 = vld [vmem:[%s3 + $0x20] sm:$0xff]
        %v584 = vld [vmem:[%s3 + $0x28] sm:$0xff]
        %v585 = vld [vmem:[%s3 + $0x30] sm:$0xff]
        %v586 = vld [vmem:[%s3 + $0x38] sm:$0xff]
        %v587 = vld [vmem:[%s3 + $0x40] sm:$0xff]
        %v588 = vld [vmem:[%s3 + $0x48] sm:$0xff]
        %v589 = vld [vmem:[%s3 + $0x50] sm:$0xff]
        %v590 = vld [vmem:[%s3 + $0x58] sm:$0xff]
        %v591 = vld [vmem:[%s3 + $0x60] sm:$0xff]
        %v592 = vld [vmem:[%s3 + $0x68] sm:$0xff]
        %v593 = vld [vmem:[%s3 + $0x70] sm:$0xff]
        %v594 = vld [vmem:[%s3 + $0x78] sm:$0xff]
        %v595 = vld [vmem:[%s3 + $0x80] sm:$0xff]
        %v596 = vld [vmem:[%s3 + $0x88] sm:$0xff]
        %v597 = vld [vmem:[%s3 + $0x90] sm:$0xff]
        %v598 = vld [vmem:[%s3 + $0x98] sm:$0xff]
        %v599 = vld [vmem:[%s3 + $0xa0] sm:$0xff]
        %v600 = vld [vmem:[%s3 + $0xa8] sm:$0xff]
        %v601 = vld [vmem:[%s3 + $0xb0] sm:$0xff]
        %v602 = vld [vmem:[%s3 + $0xb8] sm:$0xff]
        %v603 = vld [vmem:[%s3 + $0xc0] sm:$0xff]
        %v604 = vld [vmem:[%s3 + $0xc8] sm:$0xff]
        %v605 = vld [vmem:[%s3 + $0xd0] sm:$0xff]
        %v606 = vld [vmem:[%s3 + $0xd8] sm:$0xff]
        %v607 = vld [vmem:[%s3 + $0xe0] sm:$0xff]
        %v608 = vld [vmem:[%s3 + $0xe8] sm:$0xff]
        %v609 = vld [vmem:[%s3 + $0xf0] sm:$0xff]
        %v610 = vld [vmem:[%s3 + $0xf8] sm:$0xff]
        %v611 = vld [vmem:[%s3 + $0x100] sm:$0xff]
        %v612 = vld [vmem:[%s3 + $0x108] sm:$0xff]
        %v613 = vld [vmem:[%s3 + $0x110] sm:$0xff]
        %v614 = vld [vmem:[%s3 + $0x118] sm:$0xff]
        %v615 = vld [vmem:[%s3 + $0x120] sm:$0xff]
        %v616 = vld [vmem:[%s3 + $0x128] sm:$0xff]
        %v617 = vld [vmem:[%s3 + $0x130] sm:$0xff]
        %v618 = vld [vmem:[%s3 + $0x138] sm:$0xff]
        %v619 = vld [vmem:[%s3 + $0x140] sm:$0xff]
        %v620 = vld [vmem:[%s3 + $0x148] sm:$0xff]
        %v621 = vld [vmem:[%s3 + $0x150] sm:$0xff]
        %v622 = vld [vmem:[%s3 + $0x158] sm:$0xff]
        %v623 = vld [vmem:[%s3 + $0x160] sm:$0xff]
        %v624 = vld [vmem:[%s3 + $0x168] sm:$0xff]
        %v625 = vld [vmem:[%s3 + $0x170] sm:$0xff]
        %v626 = vld [vmem:[%s3 + $0x178] sm:$0xff]
        %v627 = vld [vmem:[%s3 + $0x180] sm:$0xff]
        %v628 = vld [vmem:[%s3 + $0x188] sm:$0xff]
        %v629 = vld [vmem:[%s3 + $0x190] sm:$0xff]
        %v630 = vld [vmem:[%s3 + $0x198] sm:$0xff]
        %v631 = vld [vmem:[%s3 + $0x1a0] sm:$0xff]
        %v632 = vld [vmem:[%s3 + $0x1a8] sm:$0xff]
        %v633 = vld [vmem:[%s3 + $0x1b0] sm:$0xff]
        %v634 = vld [vmem:[%s3 + $0x1b8] sm:$0xff]
        %v635 = vld [vmem:[%s3 + $0x1c0] sm:$0xff]
        %v636 = vld [vmem:[%s3 + $0x1c8] sm:$0xff]
        %v637 = vld [vmem:[%s3 + $0x1d0] sm:$0xff]
        %v638 = vld [vmem:[%s3 + $0x1d8] sm:$0xff]
        %v639 = vld [vmem:[%s3 + $0x1e0] sm:$0xff]
        %v640 = vld [vmem:[%s3 + $0x1e8] sm:$0xff]
        %v641 = vld [vmem:[%s3 + $0x1f0] sm:$0xff]
        %v642 = vld [vmem:[%s3 + $0x1f8] sm:$0xff]
        %v643 = vld [vmem:[%s4] ss:$8 sm:$0xf]
        %v644 = vld [vmem:[%s4] ss:$8 sm:$0xf0]
        %v645 = vor.u32 %v643, %v644
        %v710 = vunpack.c.l.b16 %v579
        %v711 = vunpack.c.h.b16 %v579
        %v712 = vunpack.c.l.b16 %v580
        %v713 = vunpack.c.h.b16 %v580
        %v714 = vunpack.c.l.b16 %v581
        %v715 = vunpack.c.h.b16 %v581
        %v716 = vunpack.c.l.b16 %v582
        %v717 = vunpack.c.h.b16 %v582
        %v718 = vunpack.c.l.b16 %v583
        %v719 = vunpack.c.h.b16 %v583
        %v720 = vunpack.c.l.b16 %v584
        %v721 = vunpack.c.h.b16 %v584
        %v722 = vunpack.c.l.b16 %v585
        %v723 = vunpack.c.h.b16 %v585
        %v724 = vunpack.c.l.b16 %v586
        %v725 = vunpack.c.h.b16 %v586
        %v726 = vunpack.c.l.b16 %v587
        %v727 = vunpack.c.h.b16 %v587
        %v728 = vunpack.c.l.b16 %v588
        %v729 = vunpack.c.h.b16 %v588
        %v730 = vunpack.c.l.b16 %v589
        %v731 = vunpack.c.h.b16 %v589
        %v732 = vunpack.c.l.b16 %v590
        %v733 = vunpack.c.h.b16 %v590
        %v734 = vunpack.c.l.b16 %v591
        %v735 = vunpack.c.h.b16 %v591
        %v736 = vunpack.c.l.b16 %v592
        %v737 = vunpack.c.h.b16 %v592
        %v738 = vunpack.c.l.b16 %v593
        %v739 = vunpack.c.h.b16 %v593
        %v740 = vunpack.c.l.b16 %v594
        %v741 = vunpack.c.h.b16 %v594
        %v742 = vunpack.c.l.b16 %v595
        %v743 = vunpack.c.h.b16 %v595
        %v744 = vunpack.c.l.b16 %v596
        %v745 = vunpack.c.h.b16 %v596
        %v746 = vunpack.c.l.b16 %v597
        %v747 = vunpack.c.h.b16 %v597
        %v748 = vunpack.c.l.b16 %v598
        %v749 = vunpack.c.h.b16 %v598
        %v750 = vunpack.c.l.b16 %v599
        %v751 = vunpack.c.h.b16 %v599
        %v752 = vunpack.c.l.b16 %v600
        %v753 = vunpack.c.h.b16 %v600
        %v754 = vunpack.c.l.b16 %v601
        %v755 = vunpack.c.h.b16 %v601
        %v756 = vunpack.c.l.b16 %v602
        %v757 = vunpack.c.h.b16 %v602
        %v758 = vunpack.c.l.b16 %v603
        %v759 = vunpack.c.h.b16 %v603
        %v760 = vunpack.c.l.b16 %v604
        %v761 = vunpack.c.h.b16 %v604
        %v762 = vunpack.c.l.b16 %v605
        %v763 = vunpack.c.h.b16 %v605
        %v764 = vunpack.c.l.b16 %v606
        %v765 = vunpack.c.h.b16 %v606
        %v766 = vunpack.c.l.b16 %v607
        %v767 = vunpack.c.h.b16 %v607
        %v768 = vunpack.c.l.b16 %v608
        %v769 = vunpack.c.h.b16 %v608
        %v770 = vunpack.c.l.b16 %v609
        %v771 = vunpack.c.h.b16 %v609
        %v772 = vunpack.c.l.b16 %v610
        %v773 = vunpack.c.h.b16 %v610
        %v774 = vunpack.c.l.b16 %v611
        %v775 = vunpack.c.h.b16 %v611
        %v776 = vunpack.c.l.b16 %v612
        %v777 = vunpack.c.h.b16 %v612
        %v778 = vunpack.c.l.b16 %v613
        %v779 = vunpack.c.h.b16 %v613
        %v780 = vunpack.c.l.b16 %v614
        %v781 = vunpack.c.h.b16 %v614
        %v782 = vunpack.c.l.b16 %v615
        %v783 = vunpack.c.h.b16 %v615
        %v784 = vunpack.c.l.b16 %v616
        %v785 = vunpack.c.h.b16 %v616
        %v786 = vunpack.c.l.b16 %v617
        %v787 = vunpack.c.h.b16 %v617
        %v788 = vunpack.c.l.b16 %v618
        %v789 = vunpack.c.h.b16 %v618
        %v790 = vunpack.c.l.b16 %v619
        %v791 = vunpack.c.h.b16 %v619
        %v792 = vunpack.c.l.b16 %v620
        %v793 = vunpack.c.h.b16 %v620
        %v794 = vunpack.c.l.b16 %v621
        %v795 = vunpack.c.h.b16 %v621
        %v796 = vunpack.c.l.b16 %v622
        %v797 = vunpack.c.h.b16 %v622
        %v798 = vunpack.c.l.b16 %v623
        %v799 = vunpack.c.h.b16 %v623
        %v800 = vunpack.c.l.b16 %v624
        %v801 = vunpack.c.h.b16 %v624
        %v802 = vunpack.c.l.b16 %v625
        %v803 = vunpack.c.h.b16 %v625
        %v804 = vunpack.c.l.b16 %v626
        %v805 = vunpack.c.h.b16 %v626
        %v806 = vunpack.c.l.b16 %v627
        %v807 = vunpack.c.h.b16 %v627
        %v808 = vunpack.c.l.b16 %v628
        %v809 = vunpack.c.h.b16 %v628
        %v810 = vunpack.c.l.b16 %v629
        %v811 = vunpack.c.h.b16 %v629
        %v812 = vunpack.c.l.b16 %v630
        %v813 = vunpack.c.h.b16 %v630
        %v814 = vunpack.c.l.b16 %v631
        %v815 = vunpack.c.h.b16 %v631
        %v816 = vunpack.c.l.b16 %v632
        %v817 = vunpack.c.h.b16 %v632
        %v818 = vunpack.c.l.b16 %v633
        %v819 = vunpack.c.h.b16 %v633
        %v820 = vunpack.c.l.b16 %v634
        %v821 = vunpack.c.h.b16 %v634
        %v822 = vunpack.c.l.b16 %v635
        %v823 = vunpack.c.h.b16 %v635
        %v824 = vunpack.c.l.b16 %v636
        %v825 = vunpack.c.h.b16 %v636
        %v826 = vunpack.c.l.b16 %v637
        %v827 = vunpack.c.h.b16 %v637
        %v828 = vunpack.c.l.b16 %v638
        %v829 = vunpack.c.h.b16 %v638
        %v830 = vunpack.c.l.b16 %v639
        %v831 = vunpack.c.h.b16 %v639
        %v832 = vunpack.c.l.b16 %v640
        %v833 = vunpack.c.h.b16 %v640
        %v834 = vunpack.c.l.b16 %v641
        %v835 = vunpack.c.h.b16 %v641
        %v836 = vunpack.c.l.b16 %v642
        %v837 = vunpack.c.h.b16 %v642
        %v838 = vpack.c.b16 %v718, %v710
        %v839 = vpack.c.b16 %v719, %v711
        %v840 = vpack.c.b16 %v720, %v712
        %v841 = vpack.c.b16 %v721, %v713
        %v842 = vpack.c.b16 %v722, %v714
        %v843 = vpack.c.b16 %v723, %v715
        %v844 = vpack.c.b16 %v724, %v716
        %v845 = vpack.c.b16 %v725, %v717
        %v846 = vpack.c.b16 %v734, %v726
        %v847 = vpack.c.b16 %v735, %v727
        %v848 = vpack.c.b16 %v736, %v728
        %v849 = vpack.c.b16 %v737, %v729
        %v850 = vpack.c.b16 %v738, %v730
        %v851 = vpack.c.b16 %v739, %v731
        %v852 = vpack.c.b16 %v740, %v732
        %v853 = vpack.c.b16 %v741, %v733
        %v854 = vpack.c.b16 %v750, %v742
        %v855 = vpack.c.b16 %v751, %v743
        %v856 = vpack.c.b16 %v752, %v744
        %v857 = vpack.c.b16 %v753, %v745
        %v858 = vpack.c.b16 %v754, %v746
        %v859 = vpack.c.b16 %v755, %v747
        %v860 = vpack.c.b16 %v756, %v748
        %v861 = vpack.c.b16 %v757, %v749
        %v862 = vpack.c.b16 %v766, %v758
        %v863 = vpack.c.b16 %v767, %v759
        %v864 = vpack.c.b16 %v768, %v760
        %v865 = vpack.c.b16 %v769, %v761
        %v866 = vpack.c.b16 %v770, %v762
        %v867 = vpack.c.b16 %v771, %v763
        %v868 = vpack.c.b16 %v772, %v764
        %v869 = vpack.c.b16 %v773, %v765
        %v870 = vpack.c.b16 %v782, %v774
        %v871 = vpack.c.b16 %v783, %v775
        %v872 = vpack.c.b16 %v784, %v776
        %v873 = vpack.c.b16 %v785, %v777
        %v874 = vpack.c.b16 %v786, %v778
        %v875 = vpack.c.b16 %v787, %v779
        %v876 = vpack.c.b16 %v788, %v780
        %v877 = vpack.c.b16 %v789, %v781
        %v878 = vpack.c.b16 %v798, %v790
        %v879 = vpack.c.b16 %v799, %v791
        %v880 = vpack.c.b16 %v800, %v792
        %v881 = vpack.c.b16 %v801, %v793
        %v882 = vpack.c.b16 %v802, %v794
        %v883 = vpack.c.b16 %v803, %v795
        %v884 = vpack.c.b16 %v804, %v796
        %v885 = vpack.c.b16 %v805, %v797
        %v886 = vpack.c.b16 %v814, %v806
        %v887 = vpack.c.b16 %v815, %v807
        %v888 = vpack.c.b16 %v816, %v808
        %v889 = vpack.c.b16 %v817, %v809
        %v890 = vpack.c.b16 %v818, %v810
        %v891 = vpack.c.b16 %v819, %v811
        %v892 = vpack.c.b16 %v820, %v812
        %v893 = vpack.c.b16 %v821, %v813
        %v894 = vpack.c.b16 %v830, %v822
        %v895 = vpack.c.b16 %v831, %v823
        %v896 = vpack.c.b16 %v832, %v824
        %v897 = vpack.c.b16 %v833, %v825
        %v898 = vpack.c.b16 %v834, %v826
        %v899 = vpack.c.b16 %v835, %v827
        %v900 = vpack.c.b16 %v836, %v828
        %v901 = vpack.c.b16 %v837, %v829
        %v967 = vlaneseq
        %v968 = vshrl.u32 %v967, 7
        %v969 = vsub.s32 0, %v968
        %v970 = vrot.slane %v645, %v969
        %v971 = vlaneseq
        %v972 = vshrl.u32 %v971, 7
        %v973 = vsub.s32 1, %v972
        %v974 = vrot.slane %v645, %v973
        %v975 = vlaneseq
        %v976 = vshrl.u32 %v975, 7
        %v977 = vsub.s32 2, %v976
        %v978 = vrot.slane %v645, %v977
        %v979 = vlaneseq
        %v980 = vshrl.u32 %v979, 7
        %v981 = vsub.s32 3, %v980
        %v982 = vrot.slane %v645, %v981
        %v983 = vlaneseq
        %v984 = vshrl.u32 %v983, 7
        %v985 = vsub.s32 4, %v984
        %v986 = vrot.slane %v645, %v985
        %v987 = vlaneseq
        %v988 = vshrl.u32 %v987, 7
        %v989 = vsub.s32 5, %v988
        %v990 = vrot.slane %v645, %v989
        %v991 = vlaneseq
        %v992 = vshrl.u32 %v991, 7
        %v993 = vsub.s32 6, %v992
        %v994 = vrot.slane %v645, %v993
        %v995 = vlaneseq
        %v996 = vshrl.u32 %v995, 7
        %v997 = vsub.s32 7, %v996
        %v998 = vrot.slane %v645, %v997
        %1007 = vmatprep.subr.bf16.mxu0 %v895
        %1008 = vmatpush1.bf16.msra.mxu0 %v894
        %1009 = vmatprep.subr.bf16.mxu0 %v887
        %1010 = vmatpush1.bf16.msra.mxu0 %v886
        %1011 = vmatprep.subr.bf16.mxu0 %v879
        %1012 = vmatpush1.bf16.msra.mxu0 %v878
        %1013 = vmatprep.subr.bf16.mxu0 %v871
        %1014 = vmatpush1.bf16.msra.mxu0 %v870
        %1015 = vmatprep.subr.bf16.mxu0 %v863
        %1016 = vmatpush1.bf16.msra.mxu0 %v862
        %1017 = vmatprep.subr.bf16.mxu0 %v855
        %1018 = vmatpush1.bf16.msra.mxu0 %v854
        %1019 = vmatprep.subr.bf16.mxu0 %v847
        %1020 = vmatpush1.bf16.msra.mxu0 %v846
        %1021 = vmatprep.subr.bf16.mxu0 %v839
        %1022 = vmatpush1.bf16.msra.mxu0 %v838
        %1023 = vmatprep.subr.bf16.mxu0 0
        %1024 = vmatpush2.bf16.msra.mxu0 0
        %1025 = vmatprep.subr.bf16.mxu0 0
        %1026 = vmatpush2.bf16.msra.mxu0 0
        %1027 = vmatprep.subr.bf16.mxu0 0
        %1028 = vmatpush2.bf16.msra.mxu0 0
        %1029 = vmatprep.subr.bf16.mxu0 0
        %1030 = vmatpush2.bf16.msra.mxu0 0
        %1031 = vmatprep.subr.bf16.mxu0 0
        %1032 = vmatpush2.bf16.msra.mxu0 0
        %1033 = vmatprep.subr.bf16.mxu0 0
        %1034 = vmatpush2.bf16.msra.mxu0 0
        %1035 = vmatprep.subr.bf16.mxu0 0
        %1036 = vmatpush2.bf16.msra.mxu0 0
        %1037 = vmatprep.subr.bf16.mxu0 0
        %1038 = vmatpush2.bf16.msra.mxu0 0
        %1039 = vmatprep.mubr.bf16.mxu0 0
        %1040 = vmatmul.mubr.bf16.gmra.mxu0 %v578
        %v1041 = vpop.f32.mrf.mxu0
        %v1042 = vadd.f32 %v970, %v1041
        %v1043 = vpop.f32.mrf.mxu0
        %v1044 = vadd.f32 %v974, %v1043
        %v1045 = vpop.f32.mrf.mxu0
        %v1046 = vpop.f32.mrf.mxu0
        %1047 = vdwg.mxu0
        %1048 = vmatprep.subr.bf16.mxu0 %v897
        %1049 = vmatpush1.bf16.msra.mxu0 %v896
        %1050 = vmatprep.subr.bf16.mxu0 %v889
        %1051 = vmatpush1.bf16.msra.mxu0 %v888
        %1052 = vmatprep.subr.bf16.mxu0 %v881
        %1053 = vmatpush1.bf16.msra.mxu0 %v880
        %1054 = vmatprep.subr.bf16.mxu0 %v873
        %1055 = vmatpush1.bf16.msra.mxu0 %v872
        %1056 = vmatprep.subr.bf16.mxu0 %v865
        %1057 = vmatpush1.bf16.msra.mxu0 %v864
        %1058 = vmatprep.subr.bf16.mxu0 %v857
        %1059 = vmatpush1.bf16.msra.mxu0 %v856
        %1060 = vmatprep.subr.bf16.mxu0 %v849
        %1061 = vmatpush1.bf16.msra.mxu0 %v848
        %1062 = vmatprep.subr.bf16.mxu0 %v841
        %1063 = vmatpush1.bf16.msra.mxu0 %v840
        %1064 = vmatprep.subr.bf16.mxu0 0
        %1065 = vmatpush2.bf16.msra.mxu0 0
        %1066 = vmatprep.subr.bf16.mxu0 0
        %1067 = vmatpush2.bf16.msra.mxu0 0
        %1068 = vmatprep.subr.bf16.mxu0 0
        %1069 = vmatpush2.bf16.msra.mxu0 0
        %1070 = vmatprep.subr.bf16.mxu0 0
        %1071 = vmatpush2.bf16.msra.mxu0 0
        %1072 = vmatprep.subr.bf16.mxu0 0
        %1073 = vmatpush2.bf16.msra.mxu0 0
        %1074 = vmatprep.subr.bf16.mxu0 0
        %1075 = vmatpush2.bf16.msra.mxu0 0
        %1076 = vmatprep.subr.bf16.mxu0 0
        %1077 = vmatpush2.bf16.msra.mxu0 0
        %1078 = vmatprep.subr.bf16.mxu0 0
        %1079 = vmatpush2.bf16.msra.mxu0 0
        %1080 = vmatprep.mubr.bf16.mxu0 0
        %1081 = vmatmul.mubr.bf16.gmra.mxu0 %v578
        %v1082 = vpop.f32.mrf.mxu0
        %v1083 = vadd.f32 %v978, %v1082
        %v1084 = vpop.f32.mrf.mxu0
        %v1085 = vadd.f32 %v982, %v1084
        %v1086 = vpop.f32.mrf.mxu0
        %v1087 = vpop.f32.mrf.mxu0
        %1088 = vdwg.mxu0
        %1089 = vmatprep.subr.bf16.mxu0 %v899
        %1090 = vmatpush1.bf16.msra.mxu0 %v898
        %1091 = vmatprep.subr.bf16.mxu0 %v891
        %1092 = vmatpush1.bf16.msra.mxu0 %v890
        %1093 = vmatprep.subr.bf16.mxu0 %v883
        %1094 = vmatpush1.bf16.msra.mxu0 %v882
        %1095 = vmatprep.subr.bf16.mxu0 %v875
        %1096 = vmatpush1.bf16.msra.mxu0 %v874
        %1097 = vmatprep.subr.bf16.mxu0 %v867
        %1098 = vmatpush1.bf16.msra.mxu0 %v866
        %1099 = vmatprep.subr.bf16.mxu0 %v859
        %1100 = vmatpush1.bf16.msra.mxu0 %v858
        %1101 = vmatprep.subr.bf16.mxu0 %v851
        %1102 = vmatpush1.bf16.msra.mxu0 %v850
        %1103 = vmatprep.subr.bf16.mxu0 %v843
        %1104 = vmatpush1.bf16.msra.mxu0 %v842
        %1105 = vmatprep.subr.bf16.mxu0 0
        %1106 = vmatpush2.bf16.msra.mxu0 0
        %1107 = vmatprep.subr.bf16.mxu0 0
        %1108 = vmatpush2.bf16.msra.mxu0 0
        %1109 = vmatprep.subr.bf16.mxu0 0
        %1110 = vmatpush2.bf16.msra.mxu0 0
        %1111 = vmatprep.subr.bf16.mxu0 0
        %1112 = vmatpush2.bf16.msra.mxu0 0
        %1113 = vmatprep.subr.bf16.mxu0 0
        %1114 = vmatpush2.bf16.msra.mxu0 0
        %1115 = vmatprep.subr.bf16.mxu0 0
        %1116 = vmatpush2.bf16.msra.mxu0 0
        %1117 = vmatprep.subr.bf16.mxu0 0
        %1118 = vmatpush2.bf16.msra.mxu0 0
        %1119 = vmatprep.subr.bf16.mxu0 0
        %1120 = vmatpush2.bf16.msra.mxu0 0
        %1121 = vmatprep.mubr.bf16.mxu0 0
        %1122 = vmatmul.mubr.bf16.gmra.mxu0 %v578
        %v1123 = vpop.f32.mrf.mxu0
        %v1124 = vadd.f32 %v986, %v1123
        %v1125 = vpop.f32.mrf.mxu0
        %v1126 = vadd.f32 %v990, %v1125
        %v1127 = vpop.f32.mrf.mxu0
        %v1128 = vpop.f32.mrf.mxu0
        %1129 = vdwg.mxu0
        %1130 = vmatprep.subr.bf16.mxu0 %v901
        %1131 = vmatpush1.bf16.msra.mxu0 %v900
        %1132 = vmatprep.subr.bf16.mxu0 %v893
        %1133 = vmatpush1.bf16.msra.mxu0 %v892
        %1134 = vmatprep.subr.bf16.mxu0 %v885
        %1135 = vmatpush1.bf16.msra.mxu0 %v884
        %1136 = vmatprep.subr.bf16.mxu0 %v877
        %1137 = vmatpush1.bf16.msra.mxu0 %v876
        %1138 = vmatprep.subr.bf16.mxu0 %v869
        %1139 = vmatpush1.bf16.msra.mxu0 %v868
        %1140 = vmatprep.subr.bf16.mxu0 %v861
        %1141 = vmatpush1.bf16.msra.mxu0 %v860
        %1142 = vmatprep.subr.bf16.mxu0 %v853
        %1143 = vmatpush1.bf16.msra.mxu0 %v852
        %1144 = vmatprep.subr.bf16.mxu0 %v845
        %1145 = vmatpush1.bf16.msra.mxu0 %v844
        %1146 = vmatprep.subr.bf16.mxu0 0
        %1147 = vmatpush2.bf16.msra.mxu0 0
        %1148 = vmatprep.subr.bf16.mxu0 0
        %1149 = vmatpush2.bf16.msra.mxu0 0
        %1150 = vmatprep.subr.bf16.mxu0 0
        %1151 = vmatpush2.bf16.msra.mxu0 0
        %1152 = vmatprep.subr.bf16.mxu0 0
        %1153 = vmatpush2.bf16.msra.mxu0 0
        %1154 = vmatprep.subr.bf16.mxu0 0
        %1155 = vmatpush2.bf16.msra.mxu0 0
        %1156 = vmatprep.subr.bf16.mxu0 0
        %1157 = vmatpush2.bf16.msra.mxu0 0
        %1158 = vmatprep.subr.bf16.mxu0 0
        %1159 = vmatpush2.bf16.msra.mxu0 0
        %1160 = vmatprep.subr.bf16.mxu0 0
        %1161 = vmatpush2.bf16.msra.mxu0 0
        %1162 = vmatprep.mubr.bf16.mxu0 0
        %1163 = vmatmul.mubr.bf16.gmra.mxu0 %v578
        %v1164 = vpop.f32.mrf.mxu0
        %v1165 = vadd.f32 %v994, %v1164
        %v1166 = vpop.f32.mrf.mxu0
        %v1167 = vadd.f32 %v998, %v1166
        %v1168 = vpop.f32.mrf.mxu0
        %v1169 = vpop.f32.mrf.mxu0
        %1170 = vdwg.mxu0
        %s1171 = scalar_lea.vmem %s4, 3
        %v1172 = vld [vmem:[%s1171] ss:$8 sm:$0xf]
        %v1173 = vld [vmem:[%s1171] ss:$8 sm:$0xf0]
        %v1174 = vor.u32 %v1172, %v1173
        %v1176 = vlaneseq
        %v1177 = vshrl.u32 %v1176, 7
        %v1178 = vsub.s32 0, %v1177
        %v1179 = vrot.slane %v1174, %v1178
        %v1180 = vlaneseq
        %v1181 = vshrl.u32 %v1180, 7
        %v1182 = vsub.s32 1, %v1181
        %v1183 = vrot.slane %v1174, %v1182
        %v1184 = vlaneseq
        %v1185 = vshrl.u32 %v1184, 7
        %v1186 = vsub.s32 2, %v1185
        %v1187 = vrot.slane %v1174, %v1186
        %v1188 = vlaneseq
        %v1189 = vshrl.u32 %v1188, 7
        %v1190 = vsub.s32 3, %v1189
        %v1191 = vrot.slane %v1174, %v1190
        %v1192 = vlaneseq
        %v1193 = vshrl.u32 %v1192, 7
        %v1194 = vsub.s32 4, %v1193
        %v1195 = vrot.slane %v1174, %v1194
        %v1196 = vlaneseq
        %v1197 = vshrl.u32 %v1196, 7
        %v1198 = vsub.s32 5, %v1197
        %v1199 = vrot.slane %v1174, %v1198
        %v1200 = vlaneseq
        %v1201 = vshrl.u32 %v1200, 7
        %v1202 = vsub.s32 6, %v1201
        %v1203 = vrot.slane %v1174, %v1202
        %v1204 = vlaneseq
        %v1205 = vshrl.u32 %v1204, 7
        %v1206 = vsub.s32 7, %v1205
        %v1207 = vrot.slane %v1174, %v1206
        %v1216 = vsub.f32 %v1042, %v1179
        %v1217 = vsub.f32 %v1044, %v1183
        %v1218 = vsub.f32 %v1083, %v1187
        %v1219 = vsub.f32 %v1085, %v1191
        %v1220 = vsub.f32 %v1124, %v1195
        %v1221 = vsub.f32 %v1126, %v1199
        %v1222 = vsub.f32 %v1165, %v1203
        %v1223 = vsub.f32 %v1167, %v1207
        %s1224 = scalar_lea.vmem %s4, 4
        %v1225 = vld [vmem:[%s1224] ss:$8 sm:$0xf]
        %v1226 = vld [vmem:[%s1224] ss:$8 sm:$0xf0]
        %v1227 = vor.u32 %v1225, %v1226
        %v1228 = vadd.f32 %v1227, 1e-05
        %v1229 = vrsqrt.pop %v1228
        %v1231 = vlaneseq
        %v1232 = vshrl.u32 %v1231, 7
        %v1233 = vsub.s32 0, %v1232
        %v1234 = vrot.slane %v1229, %v1233
        %v1235 = vlaneseq
        %v1236 = vshrl.u32 %v1235, 7
        %v1237 = vsub.s32 1, %v1236
        %v1238 = vrot.slane %v1229, %v1237
        %v1239 = vlaneseq
        %v1240 = vshrl.u32 %v1239, 7
        %v1241 = vsub.s32 2, %v1240
        %v1242 = vrot.slane %v1229, %v1241
        %v1243 = vlaneseq
        %v1244 = vshrl.u32 %v1243, 7
        %v1245 = vsub.s32 3, %v1244
        %v1246 = vrot.slane %v1229, %v1245
        %v1247 = vlaneseq
        %v1248 = vshrl.u32 %v1247, 7
        %v1249 = vsub.s32 4, %v1248
        %v1250 = vrot.slane %v1229, %v1249
        %v1251 = vlaneseq
        %v1252 = vshrl.u32 %v1251, 7
        %v1253 = vsub.s32 5, %v1252
        %v1254 = vrot.slane %v1229, %v1253
        %v1255 = vlaneseq
        %v1256 = vshrl.u32 %v1255, 7
        %v1257 = vsub.s32 6, %v1256
        %v1258 = vrot.slane %v1229, %v1257
        %v1259 = vlaneseq
        %v1260 = vshrl.u32 %v1259, 7
        %v1261 = vsub.s32 7, %v1260
        %v1262 = vrot.slane %v1229, %v1261
        %v1271 = vmul.f32 %v1216, %v1234
        %v1272 = vmul.f32 %v1217, %v1238
        %v1273 = vmul.f32 %v1218, %v1242
        %v1274 = vmul.f32 %v1219, %v1246
        %v1275 = vmul.f32 %v1220, %v1250
        %v1276 = vmul.f32 %v1221, %v1254
        %v1277 = vmul.f32 %v1222, %v1258
        %v1278 = vmul.f32 %v1223, %v1262
        %s1279 = scalar_lea.vmem %s4, 1
        %v1280 = vld [vmem:[%s1279] ss:$8 sm:$0xf]
        %v1281 = vld [vmem:[%s1279] ss:$8 sm:$0xf0]
        %v1282 = vor.u32 %v1280, %v1281
        %v1284 = vlaneseq
        %v1285 = vshrl.u32 %v1284, 7
        %v1286 = vsub.s32 0, %v1285
        %v1287 = vrot.slane %v1282, %v1286
        %v1288 = vlaneseq
        %v1289 = vshrl.u32 %v1288, 7
        %v1290 = vsub.s32 1, %v1289
        %v1291 = vrot.slane %v1282, %v1290
        %v1292 = vlaneseq
        %v1293 = vshrl.u32 %v1292, 7
        %v1294 = vsub.s32 2, %v1293
        %v1295 = vrot.slane %v1282, %v1294
        %v1296 = vlaneseq
        %v1297 = vshrl.u32 %v1296, 7
        %v1298 = vsub.s32 3, %v1297
        %v1299 = vrot.slane %v1282, %v1298
        %v1300 = vlaneseq
        %v1301 = vshrl.u32 %v1300, 7
        %v1302 = vsub.s32 4, %v1301
        %v1303 = vrot.slane %v1282, %v1302
        %v1304 = vlaneseq
        %v1305 = vshrl.u32 %v1304, 7
        %v1306 = vsub.s32 5, %v1305
        %v1307 = vrot.slane %v1282, %v1306
        %v1308 = vlaneseq
        %v1309 = vshrl.u32 %v1308, 7
        %v1310 = vsub.s32 6, %v1309
        %v1311 = vrot.slane %v1282, %v1310
        %v1312 = vlaneseq
        %v1313 = vshrl.u32 %v1312, 7
        %v1314 = vsub.s32 7, %v1313
        %v1315 = vrot.slane %v1282, %v1314
        %v1324 = vmul.f32 %v1271, %v1287
        %v1325 = vmul.f32 %v1272, %v1291
        %v1326 = vmul.f32 %v1273, %v1295
        %v1327 = vmul.f32 %v1274, %v1299
        %v1328 = vmul.f32 %v1275, %v1303
        %v1329 = vmul.f32 %v1276, %v1307
        %v1330 = vmul.f32 %v1277, %v1311
        %v1331 = vmul.f32 %v1278, %v1315
        %s1332 = scalar_lea.vmem %s4, 2
        %v1333 = vld [vmem:[%s1332] ss:$8 sm:$0xf]
        %v1334 = vld [vmem:[%s1332] ss:$8 sm:$0xf0]
        %v1335 = vor.u32 %v1333, %v1334
        %v1337 = vlaneseq
        %v1338 = vshrl.u32 %v1337, 7
        %v1339 = vsub.s32 0, %v1338
        %v1340 = vrot.slane %v1335, %v1339
        %v1341 = vlaneseq
        %v1342 = vshrl.u32 %v1341, 7
        %v1343 = vsub.s32 1, %v1342
        %v1344 = vrot.slane %v1335, %v1343
        %v1345 = vlaneseq
        %v1346 = vshrl.u32 %v1345, 7
        %v1347 = vsub.s32 2, %v1346
        %v1348 = vrot.slane %v1335, %v1347
        %v1349 = vlaneseq
        %v1350 = vshrl.u32 %v1349, 7
        %v1351 = vsub.s32 3, %v1350
        %v1352 = vrot.slane %v1335, %v1351
        %v1353 = vlaneseq
        %v1354 = vshrl.u32 %v1353, 7
        %v1355 = vsub.s32 4, %v1354
        %v1356 = vrot.slane %v1335, %v1355
        %v1357 = vlaneseq
        %v1358 = vshrl.u32 %v1357, 7
        %v1359 = vsub.s32 5, %v1358
        %v1360 = vrot.slane %v1335, %v1359
        %v1361 = vlaneseq
        %v1362 = vshrl.u32 %v1361, 7
        %v1363 = vsub.s32 6, %v1362
        %v1364 = vrot.slane %v1335, %v1363
        %v1365 = vlaneseq
        %v1366 = vshrl.u32 %v1365, 7
        %v1367 = vsub.s32 7, %v1366
        %v1368 = vrot.slane %v1335, %v1367
        %v1377 = vadd.f32 %v1324, %v1340
        %v1378 = vadd.f32 %v1325, %v1344
        %v1379 = vadd.f32 %v1326, %v1348
        %v1380 = vadd.f32 %v1327, %v1352
        %v1381 = vadd.f32 %v1328, %v1356
        %v1382 = vadd.f32 %v1329, %v1360
        %v1383 = vadd.f32 %v1330, %v1364
        %v1384 = vadd.f32 %v1331, %v1368
        %v1385 = vmax.f32 %v1377, 0.0
        %v1386 = vmax.f32 %v1378, 0.0
        %v1387 = vmax.f32 %v1379, 0.0
        %v1388 = vmax.f32 %v1380, 0.0
        %v1389 = vmax.f32 %v1381, 0.0
        %v1390 = vmax.f32 %v1382, 0.0
        %v1391 = vmax.f32 %v1383, 0.0
        %v1392 = vmax.f32 %v1384, 0.0
        %s1393 = scalar_lea.vmem %s4, 5
        %v1394 = vld [vmem:[%s1393] ss:$8 sm:$0xf]
        %v1395 = vld [vmem:[%s1393] ss:$8 sm:$0xf0]
        %v1396 = vor.u32 %v1394, %v1395
        %v1398 = vlaneseq
        %v1399 = vshrl.u32 %v1398, 7
        %v1400 = vsub.s32 0, %v1399
        %v1401 = vrot.slane %v1396, %v1400
        %v1402 = vlaneseq
        %v1403 = vshrl.u32 %v1402, 7
        %v1404 = vsub.s32 1, %v1403
        %v1405 = vrot.slane %v1396, %v1404
        %v1406 = vlaneseq
        %v1407 = vshrl.u32 %v1406, 7
        %v1408 = vsub.s32 2, %v1407
        %v1409 = vrot.slane %v1396, %v1408
        %v1410 = vlaneseq
        %v1411 = vshrl.u32 %v1410, 7
        %v1412 = vsub.s32 3, %v1411
        %v1413 = vrot.slane %v1396, %v1412
        %v1414 = vlaneseq
        %v1415 = vshrl.u32 %v1414, 7
        %v1416 = vsub.s32 4, %v1415
        %v1417 = vrot.slane %v1396, %v1416
        %v1418 = vlaneseq
        %v1419 = vshrl.u32 %v1418, 7
        %v1420 = vsub.s32 5, %v1419
        %v1421 = vrot.slane %v1396, %v1420
        %v1422 = vlaneseq
        %v1423 = vshrl.u32 %v1422, 7
        %v1424 = vsub.s32 6, %v1423
        %v1425 = vrot.slane %v1396, %v1424
        %v1426 = vlaneseq
        %v1427 = vshrl.u32 %v1426, 7
        %v1428 = vsub.s32 7, %v1427
        %v1429 = vrot.slane %v1396, %v1428
        %v1438 = vmul.f32 %v1385, %v1401
        %v1439 = vmul.f32 %v1386, %v1405
        %v1440 = vmul.f32 %v1387, %v1409
        %v1441 = vmul.f32 %v1388, %v1413
        %v1442 = vmul.f32 %v1389, %v1417
        %v1443 = vmul.f32 %v1390, %v1421
        %v1444 = vmul.f32 %v1391, %v1425
        %v1445 = vmul.f32 %v1392, %v1429
        %vm1446 = vcmask 1040384
        %v1447 = vsel %vm1446, %v1438, 0.0
        %v1448 = vsel %vm1446, %v1439, 0.0
        %v1449 = vadd.f32 %v1447, %v1448
        %v1450 = vsel %vm1446, %v1440, 0.0
        %v1451 = vadd.f32 %v1449, %v1450
        %v1452 = vsel %vm1446, %v1441, 0.0
        %v1453 = vadd.f32 %v1451, %v1452
        %v1454 = vsel %vm1446, %v1442, 0.0
        %v1455 = vadd.f32 %v1453, %v1454
        %v1456 = vsel %vm1446, %v1443, 0.0
        %v1457 = vadd.f32 %v1455, %v1456
        %v1458 = vsel %vm1446, %v1444, 0.0
        %v1459 = vadd.f32 %v1457, %v1458
        %v1460 = vsel %vm1446, %v1445, 0.0
        %v1461 = vadd.f32 %v1459, %v1460
        %1462 = vadd.xlane.f32.xlu0 %v1461
        %v1463 = vpop.xlane.xlu0 %1462
        %v1464 = vld [vmem:[%s4 + $0x6] ss:$0 sm:$0xff]
        %v1465 = vadd.f32 %v1463, %v1464
        %1466 = vst [vmem:[%s248] sm:$0x1] %v1465
      $region52: #{efficientnet_model_forward.1} parent=39 // pred_fallthru
        _
      %p1467 = scmp.lt.s32.totalorder %s20, 1
      %s1468 = scalar_select %p1467, %s20, 1
      %s1469 = scalar_lea.vmem %s5, %s1468
      // Predicated region
      $region53: #{efficientnet_model_forward.1} parent=39 // pred_check
        %p1470 = pneg %p158
      $region54: #{efficientnet_model_forward.1} parent=39 // pred_check_branch
        %1472 = sbr.rel (%p1470) target = $region56
      $region55: #{efficientnet_model_forward.1} parent=39 // pred_region
        _
      $region56: #{efficientnet_model_forward.1} parent=39 // pred_fallthru
        _
    $region40: #{efficientnet_model_forward.1} parent=5 // pred_fallthru
      _
    %p1473 = scmp.le.s32.totalorder 2, %s11
    // Predicated region
    $region57: #{efficientnet_model_forward.1} parent=5 // pred_check
      %p1474 = pneg %p1473
    $region58: #{efficientnet_model_forward.1} parent=5 // pred_check_branch
      %1476 = sbr.rel (%p1474) target = $region60
    $region59: #{efficientnet_model_forward.1} parent=5 // pred_region
      %s1477 = ssub.s32 %s11, 2
      // Predicated region
      $region61: #{efficientnet_model_forward.1} parent=59 // pred_check
        %p1478 = pneg %p164
      $region62: #{efficientnet_model_forward.1} parent=59 // pred_check_branch
        %1480 = sbr.rel (%p1478) target = $region64
      $region63: #{efficientnet_model_forward.1} parent=59 // pred_region
        %p1481 = scmp.lt.s32.totalorder %s22, 1
        %s1482 = scalar_select %p1481, %s22, 1
        %s1483 = scalar_lea.vmem %s5, %s1482
      $region64: #{efficientnet_model_forward.1} parent=59 // pred_fallthru
        _
    $region60: #{efficientnet_model_forward.1} parent=5 // pred_fallthru
      _
  $region6: #{efficientnet_model_forward.1} parent=0 // loop_footer
    %s15 = sadd.s32 1, %s11
  $region7: #{efficientnet_model_forward.1} parent=0 // loop_footer_branch
    %10 = sbr.rel target = $region3
  $region8: #{efficientnet_model_forward.1} parent=0 // loop_exit
    _

</llo_original>
